<compile_context>
chip_gen: v5e
topology: v5e:2x2
jax: 0.10.0
libtpu: 0.0.40
codegen_flags: <defaults>
</compile_context>

<pallas_src>
import functools
import math

import jax
import jax.numpy as jnp
from jax.experimental import pallas as pl
from jax.experimental.pallas import tpu as pltpu


# ----------------------------------------------------------------------------
# helpers
# ----------------------------------------------------------------------------
def _layernorm(x, g, b, eps=1e-5):
    mu = jnp.mean(x, axis=-1, keepdims=True)
    var = jnp.mean((x - mu) ** 2, axis=-1, keepdims=True)
    return (x - mu) * jax.lax.rsqrt(var + eps) * g + b


def _nbytes(shape, dtype):
    return math.prod(shape) * jnp.dtype(dtype).itemsize


def _vmem_limit(in_tile_bytes, out_tile_bytes, scratch_bytes=0,
                cap=48 * 1024 * 1024):
    """Double-buffered in/out tiles + scratch + slack; capped for v7x (64MiB)."""
    est = 2 * (sum(in_tile_bytes) + sum(out_tile_bytes)) + scratch_bytes
    est += 2 * 1024 * 1024
    return int(min(cap, max(est, 4 * 1024 * 1024)))


def _pick_v_tile(V, H, budget=40 * 1024 * 1024):
    """Largest 256-multiple divisor of V (<=2048) whose double-buffered wlm +
    logits tiles fit the VMEM budget."""
    for cand in (2048, 1024, 512, 256, 128):
        if cand <= V and V % cand == 0:
            need = 2 * H * cand * 2 + 2 * 256 * cand * 2   # bf16 tiles, 2x buffered
            if need <= budget:
                return cand
    return V


def _pick_row_tile(rows):
    """>=2 row tiles when possible (keeps a parallel axis for v7x's 2 TCs);
    tiles are multiples of 16 (bf16 sublane packing), capped at 256 MXU rows."""
    for cand in (256, 128, 64, 32, 16):
        if cand < rows and rows % cand == 0:
            return cand
    return rows


# ----------------------------------------------------------------------------
# kernel 1: transformer body (one batch row per grid step)
# ----------------------------------------------------------------------------
def transformer_body_kernel(emb_ref,
                            ln1_g_ref, ln1_b_ref,
                            wq_ref, wk_ref, wv_ref, wo_ref,
                            ln2_g_ref, ln2_b_ref,
                            w1_ref, b1_ref, w2_ref, b2_ref,
                            lnf_g_ref, lnf_b_ref,
                            hid_ref):
    x = emb_ref[0].astype(jnp.float32)                     # (T, H) f32
    T, H = x.shape
    scale = 1.0 / (H ** 0.5)

    # ---- causal self-attention (bf16 MXU operands, f32 accumulation) ----
    h = _layernorm(x, ln1_g_ref[0], ln1_b_ref[0])
    hb = h.astype(jnp.bfloat16)                            # reused for q/k/v
    q = jnp.dot(hb, wq_ref[...], preferred_element_type=jnp.float32)
    k = jnp.dot(hb, wk_ref[...], preferred_element_type=jnp.float32)
    vv = jnp.dot(hb, wv_ref[...], preferred_element_type=jnp.float32)
    qb = (q * scale).astype(jnp.bfloat16)                  # scale folded into q
    kb = k.astype(jnp.bfloat16)
    scores = jax.lax.dot_general(
        qb, kb, dimension_numbers=(((1,), (1,)), ((), ())),
        preferred_element_type=jnp.float32)                # (T, T) f32
    row = jax.lax.broadcasted_iota(jnp.int32, scores.shape, 0)
    col = jax.lax.broadcasted_iota(jnp.int32, scores.shape, 1)
    scores = jnp.where(col <= row, scores, -1e30)
    mx = jnp.max(scores, axis=-1, keepdims=True)
    e = jnp.exp(scores - mx)
    p = e * pl.reciprocal(jnp.sum(e, axis=-1, keepdims=True), approx=True)
    attn = jnp.dot(p.astype(jnp.bfloat16), vv.astype(jnp.bfloat16),
                   preferred_element_type=jnp.float32)
    x = x + jnp.dot(attn.astype(jnp.bfloat16), wo_ref[...],
                    preferred_element_type=jnp.float32)

    # ---- MLP block ----
    h = _layernorm(x, ln2_g_ref[0], ln2_b_ref[0])
    h1 = jnp.dot(h.astype(jnp.bfloat16), w1_ref[...],
                 preferred_element_type=jnp.float32) + b1_ref[0]
    h1 = jax.nn.gelu(h1, approximate=True)
    x = x + jnp.dot(h1.astype(jnp.bfloat16), w2_ref[...],
                    preferred_element_type=jnp.float32) + b2_ref[0]

    # ---- final LN; emit bf16 hidden for the LM-head kernel ----
    hid_ref[0] = _layernorm(x, lnf_g_ref[0], lnf_b_ref[0]).astype(hid_ref.dtype)


def _transformer_body(body_params, inputs_embeds):
    B, T, H = inputs_embeds.shape
    in_specs = [pl.BlockSpec((1, T, H), lambda b: (b, 0, 0))]
    in_specs += [pl.BlockSpec(p.shape, lambda b: (0, 0)) for p in body_params]
    out_spec = pl.BlockSpec((1, T, H), lambda b: (b, 0, 0))

    in_bytes = [_nbytes((1, T, H), inputs_embeds.dtype)]
    in_bytes += [_nbytes(p.shape, p.dtype) for p in body_params]
    out_bytes = [_nbytes((1, T, H), jnp.bfloat16)]

    return pl.pallas_call(
        transformer_body_kernel,
        grid=(B,),
        in_specs=in_specs,
        out_specs=out_spec,
        out_shape=jax.ShapeDtypeStruct((B, T, H), jnp.bfloat16),
        compiler_params=pltpu.CompilerParams(
            dimension_semantics=("parallel",),
            vmem_limit_bytes=_vmem_limit(in_bytes, out_bytes)),
    )(inputs_embeds, *body_params)


# ----------------------------------------------------------------------------
# kernel 2: batch-folded LM head + shifted cross-entropy (online logsumexp)
# ----------------------------------------------------------------------------
def lm_head_ce_kernel(hid_ref, lab_ref, wlm_ref, *rest, with_logits):
    if with_logits:
        logits_ref, nll_ref, m_scr, l_scr, picked_scr = rest
    else:
        nll_ref, m_scr, l_scr, picked_scr = rest
        logits_ref = None

    v = pl.program_id(1)
    nv = pl.num_programs(1)
    tv = wlm_ref.shape[1]                                  # vocab tile width

    @pl.when(v == 0)
    def _():
        m_scr[...] = jnp.full(m_scr.shape, -1e30, m_scr.dtype)
        l_scr[...] = jnp.zeros(l_scr.shape, l_scr.dtype)
        picked_scr[...] = jnp.zeros(picked_scr.shape, picked_scr.dtype)

    # (R, H) bf16 x (H, tv) bf16 -> (R, tv) f32; R = row_tile (batch folded in)
    logits = jnp.dot(hid_ref[...], wlm_ref[...],
                     preferred_element_type=jnp.float32)

    if logits_ref is not None:
        logits_ref[...] = logits.astype(logits_ref.dtype)

    # ---- online logsumexp across vocab chunks ----
    m_prev = m_scr[...]
    m_new = jnp.maximum(m_prev, jnp.max(logits, axis=-1, keepdims=True))
    l_scr[...] = (l_scr[...] * jnp.exp(m_prev - m_new)
                  + jnp.sum(jnp.exp(logits - m_new), axis=-1, keepdims=True))
    m_scr[...] = m_new

    # ---- gather the target logit (no one-hot, local-iota compare) ----
    lab = lab_ref[...]                                     # (R, 1) int32 shifted
    lab_local = lab - v * tv                               # (R,1) sub, not (R,tv) add
    col = jax.lax.broadcasted_iota(jnp.int32, logits.shape, 1)
    hit = (col == lab_local).astype(jnp.float32)           # ignore_index never hits
    picked_scr[...] = picked_scr[...] + jnp.sum(logits * hit, axis=-1,
                                                keepdims=True)

    # ---- finalize: per-row-tile NLL sum, lane-dense writeback ----
    @pl.when(v == nv - 1)
    def _():
        lse = m_scr[...] + jnp.log(l_scr[...])
        valid = (lab >= 0).astype(jnp.float32)
        nll = (lse - picked_scr[...]) * valid               # (R, 1)
        s = jnp.sum(nll, axis=0, keepdims=True)             # (1, 1)
        nll_ref[0] = jnp.broadcast_to(s, nll_ref.shape[1:])


def _lm_head_ce(hidden2, labels2, wlm, *, v_tile, row_tile, return_logits):
    R, H = hidden2.shape
    V = wlm.shape[1]
    assert V % v_tile == 0 and R % row_tile == 0
    nv = V // v_tile
    nr = R // row_tile

    in_specs = [
        pl.BlockSpec((row_tile, H), lambda r, v: (r, 0)),   # hidden (bf16)
        pl.BlockSpec((row_tile, 1), lambda r, v: (r, 0)),   # shifted labels
        pl.BlockSpec((H, v_tile), lambda r, v: (0, v)),     # lm head (vocab-tiled)
    ]
    out_specs, out_shape = [], []
    if return_logits:
        out_specs.append(pl.BlockSpec((row_tile, v_tile), lambda r, v: (r, v)))
        out_shape.append(jax.ShapeDtypeStruct((R, V), jnp.bfloat16))
    out_specs.append(pl.BlockSpec((1, 1, 128), lambda r, v: (r, 0, 0)))
    out_shape.append(jax.ShapeDtypeStruct((nr, 1, 128), jnp.float32))

    scratch_shapes = [pltpu.VMEM((row_tile, 1), jnp.float32) for _ in range(3)]

    in_bytes = [_nbytes((row_tile, H), hidden2.dtype),
                _nbytes((row_tile, 1), labels2.dtype),
                _nbytes((H, v_tile), wlm.dtype)]
    out_bytes = [_nbytes((1, 1, 128), jnp.float32)]
    if return_logits:
        out_bytes.append(_nbytes((row_tile, v_tile), jnp.bfloat16))
    scratch_bytes = 3 * _nbytes((row_tile, 1), jnp.float32)

    outs = pl.pallas_call(
        functools.partial(lm_head_ce_kernel, with_logits=return_logits),
        grid=(nr, nv),
        in_specs=in_specs,
        out_specs=out_specs,
        out_shape=out_shape,
        scratch_shapes=scratch_shapes,
        compiler_params=pltpu.CompilerParams(
            dimension_semantics=("parallel", "arbitrary"),
            vmem_limit_bytes=_vmem_limit(in_bytes, out_bytes, scratch_bytes)),
    )(hidden2, labels2, wlm)

    if return_logits:
        logits, nll = outs
    else:
        (nll,) = outs
        logits = None
    return logits, nll


# ----------------------------------------------------------------------------
# parameters + forward wrapper
# ----------------------------------------------------------------------------
def init_params(key, H, V, ff):
    ks = jax.random.split(key, 8)
    nb = lambda k, s: (0.02 * jax.random.normal(k, s)).astype(jnp.bfloat16)
    f32 = jnp.float32
    return [
        jnp.ones((1, H), f32), jnp.zeros((1, H), f32),                  # ln1
        nb(ks[0], (H, H)), nb(ks[1], (H, H)), nb(ks[2], (H, H)), nb(ks[3], (H, H)),
        jnp.ones((1, H), f32), jnp.zeros((1, H), f32),                  # ln2
        nb(ks[4], (H, ff)), jnp.zeros((1, ff), f32),                    # w1, b1
        nb(ks[5], (ff, H)), jnp.zeros((1, H), f32),                     # w2, b2
        jnp.ones((1, H), f32), jnp.zeros((1, H), f32),                  # lnf
        nb(ks[6], (H, V)),                                              # lm head
    ]


def slam_asr_forward(params, inputs_embeds, labels, vocab_size,
                     ignore_index=-100, v_tile=None, row_tile=None,
                     return_logits=True):
    """Returns (loss, logits), mimicking HF CausalLMOutput(loss, logits).
    return_logits=False skips the (B,T,V) logits writeback (loss-only path)."""
    B, T, H = inputs_embeds.shape
    V = vocab_size
    body_params, wlm = params[:-1], params[-1]
    assert wlm.shape == (H, V)

    # kernel 1: transformer body -> (B, T, H) bf16 hidden state
    hidden = _transformer_body(body_params, inputs_embeds)
    hidden2 = hidden.reshape(B * T, H)                      # fold batch into rows

    # HF-style shift: position t predicts labels[t+1]; last position ignored.
    shifted = jnp.concatenate(
        [labels[:, 1:], jnp.full((B, 1), ignore_index, labels.dtype)], axis=1)
    labels2 = shifted.reshape(B * T, 1).astype(jnp.int32)

    if v_tile is None:
        v_tile = _pick_v_tile(V, H)
    if row_tile is None:
        row_tile = _pick_row_tile(B * T)

    # kernel 2: batch-folded LM head + CE
    logits2, nll = _lm_head_ce(hidden2, labels2, wlm, v_tile=v_tile,
                               row_tile=row_tile, return_logits=return_logits)

    n_valid = jnp.maximum(jnp.sum(shifted != ignore_index), 1).astype(jnp.float32)
    loss = jnp.sum(nll[:, 0, 0]) / n_valid
    logits = logits2.reshape(B, T, V) if return_logits else None
    return loss, logits


# ----------------------------------------------------------------------------
# pure-JAX reference (f32) for correctness checking
# ----------------------------------------------------------------------------
def reference_forward(params, inputs_embeds, labels, V, ignore_index=-100):
    (ln1_g, ln1_b, wq, wk, wv, wo, ln2_g, ln2_b, w1, b1, w2, b2,
     lnf_g, lnf_b, wlm) = params
    f32 = jnp.float32
    x = inputs_embeds.astype(f32)
    B, T, H = x.shape
    h = _layernorm(x, ln1_g, ln1_b)
    q = h @ wq.astype(f32)
    k = h @ wk.astype(f32)
    v = h @ wv.astype(f32)
    s = jnp.einsum('bqh,bkh->bqk', q, k) / (H ** 0.5)
    mask = jnp.tril(jnp.ones((T, T), bool))
    s = jnp.where(mask, s, -1e30)
    p = jax.nn.softmax(s, axis=-1)
    attn = jnp.einsum('bqk,bkh->bqh', p, v)
    x = x + attn @ wo.astype(f32)
    h = _layernorm(x, ln2_g, ln2_b)
    h1 = jax.nn.gelu(h @ w1.astype(f32) + b1, approximate=True)
    x = x + h1 @ w2.astype(f32) + b2
    hf = _layernorm(x, lnf_g, lnf_b)
    logits = hf @ wlm.astype(f32)
    shifted = jnp.concatenate(
        [labels[:, 1:], jnp.full((B, 1), ignore_index, labels.dtype)], axis=1)
    logp = jax.nn.log_softmax(logits, axis=-1)
    valid = shifted != ignore_index
    tgt = jnp.where(valid, shifted, 0)
    nll = -jnp.take_along_axis(logp, tgt[..., None], axis=-1)[..., 0]
    loss = jnp.sum(nll * valid) / jnp.maximum(jnp.sum(valid), 1)
    return loss, logits


# ----------------------------------------------------------------------------
if __name__ == "__main__":
    # Small, MXU/lane-aligned toy config: H, FF, V multiples of 128; T mult of 16.
    # v_tile=512 (multiple of 256) -> 2 vocab chunks exercises the online LSE;
    # B*T=32 rows -> two 16-row tiles keep a 2-way parallel axis (v7x megacore).
    B, T, H, V, FF = 2, 16, 128, 1024, 256

    key = jax.random.PRNGKey(0)
    k_emb, k_lab, k_par = jax.random.split(key, 3)

    inputs_embeds = jax.random.normal(k_emb, (B, T, H), dtype=jnp.float32)
    labels = jax.random.randint(k_lab, (B, T), 0, V, dtype=jnp.int32)
    params = init_params(k_par, H, V, FF)

    loss, logits = slam_asr_forward(params, inputs_embeds, labels, V,
                                    v_tile=512, return_logits=True)
    loss_only, _ = slam_asr_forward(params, inputs_embeds, labels, V,
                                    v_tile=512, return_logits=False)
    jax.block_until_ready((loss, logits, loss_only))

    loss_ref, logits_f32_ref = reference_forward(params, inputs_embeds, labels, V)

    assert logits.shape == (B, T, V)
    assert logits.dtype == jnp.bfloat16
    assert bool(jnp.isfinite(loss))
    assert abs(float(loss) - float(loss_ref)) < 0.05, (float(loss), float(loss_ref))
    assert abs(float(loss_only) - float(loss)) < 1e-4
    max_logit_err = float(jnp.max(jnp.abs(logits.astype(jnp.float32)
                                          - logits_f32_ref)))
    assert max_logit_err < 0.1, max_logit_err
    print("KERNEL_OK")
</pallas_src>

<mosaic_0001>
module attributes {stable_mosaic.version = 11 : i64} {
  func.func @transformer_body_kernel(%arg0: i32, %arg1: memref<1x16x128xf32, #tpu.memory_space<vmem>>, %arg2: memref<1x128xf32, #tpu.memory_space<vmem>>, %arg3: memref<1x128xf32, #tpu.memory_space<vmem>>, %arg4: memref<128x128xbf16, #tpu.memory_space<vmem>>, %arg5: memref<128x128xbf16, #tpu.memory_space<vmem>>, %arg6: memref<128x128xbf16, #tpu.memory_space<vmem>>, %arg7: memref<128x128xbf16, #tpu.memory_space<vmem>>, %arg8: memref<1x128xf32, #tpu.memory_space<vmem>>, %arg9: memref<1x128xf32, #tpu.memory_space<vmem>>, %arg10: memref<128x256xbf16, #tpu.memory_space<vmem>>, %arg11: memref<1x256xf32, #tpu.memory_space<vmem>>, %arg12: memref<256x128xbf16, #tpu.memory_space<vmem>>, %arg13: memref<1x128xf32, #tpu.memory_space<vmem>>, %arg14: memref<1x128xf32, #tpu.memory_space<vmem>>, %arg15: memref<1x128xf32, #tpu.memory_space<vmem>>, %arg16: memref<1x16x128xbf16, #tpu.memory_space<vmem>>) attributes {dimension_semantics = [#tpu.dimension_semantics<parallel>], iteration_bounds = array<i64: 2>, scalar_prefetch = 0 : i64, scratch_operands = 0 : i64, tpu.core_type = #tpu.core_type<tc>, window_params = [{transform_indices = @transform_0, window_bounds = array<i64: 1, 16, 128>}, {pipeline_mode = #tpu.pipeline_mode<synchronous>, transform_indices = @transform_1, window_bounds = array<i64: 1, 128>}, {pipeline_mode = #tpu.pipeline_mode<synchronous>, transform_indices = @transform_2, window_bounds = array<i64: 1, 128>}, {pipeline_mode = #tpu.pipeline_mode<synchronous>, transform_indices = @transform_3, window_bounds = array<i64: 128, 128>}, {pipeline_mode = #tpu.pipeline_mode<synchronous>, transform_indices = @transform_4, window_bounds = array<i64: 128, 128>}, {pipeline_mode = #tpu.pipeline_mode<synchronous>, transform_indices = @transform_5, window_bounds = array<i64: 128, 128>}, {pipeline_mode = #tpu.pipeline_mode<synchronous>, transform_indices = @transform_6, window_bounds = array<i64: 128, 128>}, {pipeline_mode = #tpu.pipeline_mode<synchronous>, transform_indices = @transform_7, window_bounds = array<i64: 1, 128>}, {pipeline_mode = #tpu.pipeline_mode<synchronous>, transform_indices = @transform_8, window_bounds = array<i64: 1, 128>}, {pipeline_mode = #tpu.pipeline_mode<synchronous>, transform_indices = @transform_9, window_bounds = array<i64: 128, 256>}, {pipeline_mode = #tpu.pipeline_mode<synchronous>, transform_indices = @transform_10, window_bounds = array<i64: 1, 256>}, {pipeline_mode = #tpu.pipeline_mode<synchronous>, transform_indices = @transform_11, window_bounds = array<i64: 256, 128>}, {pipeline_mode = #tpu.pipeline_mode<synchronous>, transform_indices = @transform_12, window_bounds = array<i64: 1, 128>}, {pipeline_mode = #tpu.pipeline_mode<synchronous>, transform_indices = @transform_13, window_bounds = array<i64: 1, 128>}, {pipeline_mode = #tpu.pipeline_mode<synchronous>, transform_indices = @transform_14, window_bounds = array<i64: 1, 128>}, {transform_indices = @transform_15, window_bounds = array<i64: 1, 16, 128>}]} {
    %c0 = arith.constant 0 : index
    %c0_0 = arith.constant 0 : index
    %c0_1 = arith.constant 0 : index
    %0 = vector.load %arg1[%c0, %c0_0, %c0_1] : memref<1x16x128xf32, #tpu.memory_space<vmem>>, vector<1x16x128xf32>
    %1 = vector.shape_cast %0 : vector<1x16x128xf32> to vector<16x128xf32>
    %c0_2 = arith.constant 0 : index
    %c0_3 = arith.constant 0 : index
    %2 = vector.load %arg2[%c0_2, %c0_3] : memref<1x128xf32, #tpu.memory_space<vmem>>, vector<1x128xf32>
    %3 = vector.shape_cast %2 : vector<1x128xf32> to vector<128xf32>
    %c0_4 = arith.constant 0 : index
    %c0_5 = arith.constant 0 : index
    %4 = vector.load %arg3[%c0_4, %c0_5] : memref<1x128xf32, #tpu.memory_space<vmem>>, vector<1x128xf32>
    %5 = vector.shape_cast %4 : vector<1x128xf32> to vector<128xf32>
    %cst = arith.constant dense<0.000000e+00> : vector<16xf32>
    %6 = vector.multi_reduction <add>, %1, %cst [1] : vector<16x128xf32> to vector<16xf32>
    %7 = vector.shape_cast %6 : vector<16xf32> to vector<16x1xf32>
    %cst_6 = arith.constant 1.280000e+02 : f32
    %8 = vector.broadcast %cst_6 : f32 to vector<16x1xf32>
    %9 = arith.divf %7, %8 : vector<16x1xf32>
    %10 = vector.broadcast %9 : vector<16x1xf32> to vector<16x128xf32>
    %11 = arith.subf %1, %10 : vector<16x128xf32>
    %12 = arith.mulf %11, %11 : vector<16x128xf32>
    %cst_7 = arith.constant dense<0.000000e+00> : vector<16xf32>
    %13 = vector.multi_reduction <add>, %12, %cst_7 [1] : vector<16x128xf32> to vector<16xf32>
    %14 = vector.shape_cast %13 : vector<16xf32> to vector<16x1xf32>
    %cst_8 = arith.constant 1.280000e+02 : f32
    %15 = vector.broadcast %cst_8 : f32 to vector<16x1xf32>
    %16 = arith.divf %14, %15 : vector<16x1xf32>
    %17 = vector.broadcast %9 : vector<16x1xf32> to vector<16x128xf32>
    %18 = arith.subf %1, %17 : vector<16x128xf32>
    %cst_9 = arith.constant 9.99999974E-6 : f32
    %19 = vector.broadcast %cst_9 : f32 to vector<16x1xf32>
    %20 = arith.addf %16, %19 : vector<16x1xf32>
    %21 = math.rsqrt %20 : vector<16x1xf32>
    %22 = vector.broadcast %21 : vector<16x1xf32> to vector<16x128xf32>
    %23 = arith.mulf %18, %22 : vector<16x128xf32>
    %24 = vector.shape_cast %3 : vector<128xf32> to vector<1x128xf32>
    %25 = vector.broadcast %24 : vector<1x128xf32> to vector<16x128xf32>
    %26 = arith.mulf %23, %25 : vector<16x128xf32>
    %27 = vector.shape_cast %5 : vector<128xf32> to vector<1x128xf32>
    %28 = vector.broadcast %27 : vector<1x128xf32> to vector<16x128xf32>
    %29 = arith.addf %26, %28 : vector<16x128xf32>
    %30 = arith.truncf %29 : vector<16x128xf32> to vector<16x128xbf16>
    %c0_10 = arith.constant 0 : index
    %c0_11 = arith.constant 0 : index
    %31 = vector.load %arg4[%c0_10, %c0_11] : memref<128x128xbf16, #tpu.memory_space<vmem>>, vector<128x128xbf16>
    %cst_12 = arith.constant dense<0.000000e+00> : vector<16x128xf32>
    %32 = tpu.matmul %30, %31, %cst_12 {dimension_numbers = #tpu.dot_dimension_numbers<[1], [0], [0], [1], [0, 0, 1, 1], [], []>} : vector<16x128xbf16>, vector<128x128xbf16>, vector<16x128xf32> -> vector<16x128xf32>
    %c0_13 = arith.constant 0 : index
    %c0_14 = arith.constant 0 : index
    %33 = vector.load %arg5[%c0_13, %c0_14] : memref<128x128xbf16, #tpu.memory_space<vmem>>, vector<128x128xbf16>
    %cst_15 = arith.constant dense<0.000000e+00> : vector<16x128xf32>
    %34 = tpu.matmul %30, %33, %cst_15 {dimension_numbers = #tpu.dot_dimension_numbers<[1], [0], [0], [1], [0, 0, 1, 1], [], []>} : vector<16x128xbf16>, vector<128x128xbf16>, vector<16x128xf32> -> vector<16x128xf32>
    %c0_16 = arith.constant 0 : index
    %c0_17 = arith.constant 0 : index
    %35 = vector.load %arg6[%c0_16, %c0_17] : memref<128x128xbf16, #tpu.memory_space<vmem>>, vector<128x128xbf16>
    %cst_18 = arith.constant dense<0.000000e+00> : vector<16x128xf32>
    %36 = tpu.matmul %30, %35, %cst_18 {dimension_numbers = #tpu.dot_dimension_numbers<[1], [0], [0], [1], [0, 0, 1, 1], [], []>} : vector<16x128xbf16>, vector<128x128xbf16>, vector<16x128xf32> -> vector<16x128xf32>
    %cst_19 = arith.constant 0.0883883461 : f32
    %37 = vector.broadcast %cst_19 : f32 to vector<16x128xf32>
    %38 = arith.mulf %32, %37 : vector<16x128xf32>
    %39 = arith.truncf %38 : vector<16x128xf32> to vector<16x128xbf16>
    %40 = arith.truncf %34 : vector<16x128xf32> to vector<16x128xbf16>
    %cst_20 = arith.constant dense<0.000000e+00> : vector<16x16xf32>
    %41 = tpu.matmul %39, %40, %cst_20 {dimension_numbers = #tpu.dot_dimension_numbers<[1], [1], [0], [0], [0, 0, 1, 0], [], []>} : vector<16x128xbf16>, vector<16x128xbf16>, vector<16x16xf32> -> vector<16x16xf32>
    %42 = tpu.iota {dimensions = array<i32: 0>} : vector<16x16xi32>
    %43 = tpu.iota {dimensions = array<i32: 1>} : vector<16x16xi32>
    %44 = arith.cmpi sle, %43, %42 : vector<16x16xi32>
    %cst_21 = arith.constant -1.000000e+30 : f32
    %45 = vector.broadcast %cst_21 : f32 to vector<16x16xf32>
    %46 = arith.select %44, %41, %45 : vector<16x16xi1>, vector<16x16xf32>
    %cst_22 = arith.constant dense<0xFF800000> : vector<16xf32>
    %47 = vector.multi_reduction <maximumf>, %46, %cst_22 [1] : vector<16x16xf32> to vector<16xf32>
    %48 = vector.shape_cast %47 : vector<16xf32> to vector<16x1xf32>
    %49 = vector.broadcast %48 : vector<16x1xf32> to vector<16x16xf32>
    %50 = arith.subf %46, %49 : vector<16x16xf32>
    %51 = math.exp %50 : vector<16x16xf32>
    %cst_23 = arith.constant dense<0.000000e+00> : vector<16xf32>
    %52 = vector.multi_reduction <add>, %51, %cst_23 [1] : vector<16x16xf32> to vector<16xf32>
    %53 = vector.shape_cast %52 : vector<16xf32> to vector<16x1xf32>
    %54 = tpu.reciprocal %53 {approx = true} : vector<16x1xf32> -> vector<16x1xf32>
    %55 = vector.broadcast %54 : vector<16x1xf32> to vector<16x16xf32>
    %56 = arith.mulf %51, %55 : vector<16x16xf32>
    %57 = arith.truncf %56 : vector<16x16xf32> to vector<16x16xbf16>
    %58 = arith.truncf %36 : vector<16x128xf32> to vector<16x128xbf16>
    %cst_24 = arith.constant dense<0.000000e+00> : vector<16x128xf32>
    %59 = tpu.matmul %57, %58, %cst_24 {dimension_numbers = #tpu.dot_dimension_numbers<[1], [0], [0], [1], [0, 0, 1, 1], [], []>} : vector<16x16xbf16>, vector<16x128xbf16>, vector<16x128xf32> -> vector<16x128xf32>
    %60 = arith.truncf %59 : vector<16x128xf32> to vector<16x128xbf16>
    %c0_25 = arith.constant 0 : index
    %c0_26 = arith.constant 0 : index
    %61 = vector.load %arg7[%c0_25, %c0_26] : memref<128x128xbf16, #tpu.memory_space<vmem>>, vector<128x128xbf16>
    %cst_27 = arith.constant dense<0.000000e+00> : vector<16x128xf32>
    %62 = tpu.matmul %60, %61, %cst_27 {dimension_numbers = #tpu.dot_dimension_numbers<[1], [0], [0], [1], [0, 0, 1, 1], [], []>} : vector<16x128xbf16>, vector<128x128xbf16>, vector<16x128xf32> -> vector<16x128xf32>
    %63 = arith.addf %1, %62 : vector<16x128xf32>
    %c0_28 = arith.constant 0 : index
    %c0_29 = arith.constant 0 : index
    %64 = vector.load %arg8[%c0_28, %c0_29] : memref<1x128xf32, #tpu.memory_space<vmem>>, vector<1x128xf32>
    %65 = vector.shape_cast %64 : vector<1x128xf32> to vector<128xf32>
    %c0_30 = arith.constant 0 : index
    %c0_31 = arith.constant 0 : index
    %66 = vector.load %arg9[%c0_30, %c0_31] : memref<1x128xf32, #tpu.memory_space<vmem>>, vector<1x128xf32>
    %67 = vector.shape_cast %66 : vector<1x128xf32> to vector<128xf32>
    %cst_32 = arith.constant dense<0.000000e+00> : vector<16xf32>
    %68 = vector.multi_reduction <add>, %63, %cst_32 [1] : vector<16x128xf32> to vector<16xf32>
    %69 = vector.shape_cast %68 : vector<16xf32> to vector<16x1xf32>
    %cst_33 = arith.constant 1.280000e+02 : f32
    %70 = vector.broadcast %cst_33 : f32 to vector<16x1xf32>
    %71 = arith.divf %69, %70 : vector<16x1xf32>
    %72 = vector.broadcast %71 : vector<16x1xf32> to vector<16x128xf32>
    %73 = arith.subf %63, %72 : vector<16x128xf32>
    %74 = arith.mulf %73, %73 : vector<16x128xf32>
    %cst_34 = arith.constant dense<0.000000e+00> : vector<16xf32>
    %75 = vector.multi_reduction <add>, %74, %cst_34 [1] : vector<16x128xf32> to vector<16xf32>
    %76 = vector.shape_cast %75 : vector<16xf32> to vector<16x1xf32>
    %cst_35 = arith.constant 1.280000e+02 : f32
    %77 = vector.broadcast %cst_35 : f32 to vector<16x1xf32>
    %78 = arith.divf %76, %77 : vector<16x1xf32>
    %79 = vector.broadcast %71 : vector<16x1xf32> to vector<16x128xf32>
    %80 = arith.subf %63, %79 : vector<16x128xf32>
    %cst_36 = arith.constant 9.99999974E-6 : f32
    %81 = vector.broadcast %cst_36 : f32 to vector<16x1xf32>
    %82 = arith.addf %78, %81 : vector<16x1xf32>
    %83 = math.rsqrt %82 : vector<16x1xf32>
    %84 = vector.broadcast %83 : vector<16x1xf32> to vector<16x128xf32>
    %85 = arith.mulf %80, %84 : vector<16x128xf32>
    %86 = vector.shape_cast %65 : vector<128xf32> to vector<1x128xf32>
    %87 = vector.broadcast %86 : vector<1x128xf32> to vector<16x128xf32>
    %88 = arith.mulf %85, %87 : vector<16x128xf32>
    %89 = vector.shape_cast %67 : vector<128xf32> to vector<1x128xf32>
    %90 = vector.broadcast %89 : vector<1x128xf32> to vector<16x128xf32>
    %91 = arith.addf %88, %90 : vector<16x128xf32>
    %92 = arith.truncf %91 : vector<16x128xf32> to vector<16x128xbf16>
    %c0_37 = arith.constant 0 : index
    %c0_38 = arith.constant 0 : index
    %93 = vector.load %arg10[%c0_37, %c0_38] : memref<128x256xbf16, #tpu.memory_space<vmem>>, vector<128x256xbf16>
    %cst_39 = arith.constant dense<0.000000e+00> : vector<16x256xf32>
    %94 = tpu.matmul %92, %93, %cst_39 {dimension_numbers = #tpu.dot_dimension_numbers<[1], [0], [0], [1], [0, 0, 1, 1], [], []>} : vector<16x128xbf16>, vector<128x256xbf16>, vector<16x256xf32> -> vector<16x256xf32>
    %c0_40 = arith.constant 0 : index
    %c0_41 = arith.constant 0 : index
    %95 = vector.load %arg11[%c0_40, %c0_41] : memref<1x256xf32, #tpu.memory_space<vmem>>, vector<1x256xf32>
    %96 = vector.shape_cast %95 : vector<1x256xf32> to vector<256xf32>
    %97 = vector.shape_cast %96 : vector<256xf32> to vector<1x256xf32>
    %98 = vector.broadcast %97 : vector<1x256xf32> to vector<16x256xf32>
    %99 = arith.addf %94, %98 : vector<16x256xf32>
    %100 = arith.mulf %99, %99 : vector<16x256xf32>
    %101 = arith.mulf %99, %100 : vector<16x256xf32>
    %cst_42 = arith.constant 4.471500e-02 : f32
    %102 = vector.broadcast %cst_42 : f32 to vector<16x256xf32>
    %103 = arith.mulf %102, %101 : vector<16x256xf32>
    %104 = arith.addf %99, %103 : vector<16x256xf32>
    %cst_43 = arith.constant 0.797884583 : f32
    %105 = vector.broadcast %cst_43 : f32 to vector<16x256xf32>
    %106 = arith.mulf %105, %104 : vector<16x256xf32>
    %107 = math.tanh %106 : vector<16x256xf32>
    %cst_44 = arith.constant 1.000000e+00 : f32
    %108 = vector.broadcast %cst_44 : f32 to vector<16x256xf32>
    %109 = arith.addf %108, %107 : vector<16x256xf32>
    %cst_45 = arith.constant 5.000000e-01 : f32
    %110 = vector.broadcast %cst_45 : f32 to vector<16x256xf32>
    %111 = arith.mulf %110, %109 : vector<16x256xf32>
    %112 = arith.mulf %99, %111 : vector<16x256xf32>
    %113 = arith.truncf %112 : vector<16x256xf32> to vector<16x256xbf16>
    %c0_46 = arith.constant 0 : index
    %c0_47 = arith.constant 0 : index
    %114 = vector.load %arg12[%c0_46, %c0_47] : memref<256x128xbf16, #tpu.memory_space<vmem>>, vector<256x128xbf16>
    %cst_48 = arith.constant dense<0.000000e+00> : vector<16x128xf32>
    %115 = tpu.matmul %113, %114, %cst_48 {dimension_numbers = #tpu.dot_dimension_numbers<[1], [0], [0], [1], [0, 0, 1, 1], [], []>} : vector<16x256xbf16>, vector<256x128xbf16>, vector<16x128xf32> -> vector<16x128xf32>
    %116 = arith.addf %63, %115 : vector<16x128xf32>
    %c0_49 = arith.constant 0 : index
    %c0_50 = arith.constant 0 : index
    %117 = vector.load %arg13[%c0_49, %c0_50] : memref<1x128xf32, #tpu.memory_space<vmem>>, vector<1x128xf32>
    %118 = vector.shape_cast %117 : vector<1x128xf32> to vector<128xf32>
    %119 = vector.shape_cast %118 : vector<128xf32> to vector<1x128xf32>
    %120 = vector.broadcast %119 : vector<1x128xf32> to vector<16x128xf32>
    %121 = arith.addf %116, %120 : vector<16x128xf32>
    %c0_51 = arith.constant 0 : index
    %c0_52 = arith.constant 0 : index
    %122 = vector.load %arg14[%c0_51, %c0_52] : memref<1x128xf32, #tpu.memory_space<vmem>>, vector<1x128xf32>
    %123 = vector.shape_cast %122 : vector<1x128xf32> to vector<128xf32>
    %c0_53 = arith.constant 0 : index
    %c0_54 = arith.constant 0 : index
    %124 = vector.load %arg15[%c0_53, %c0_54] : memref<1x128xf32, #tpu.memory_space<vmem>>, vector<1x128xf32>
    %125 = vector.shape_cast %124 : vector<1x128xf32> to vector<128xf32>
    %cst_55 = arith.constant dense<0.000000e+00> : vector<16xf32>
    %126 = vector.multi_reduction <add>, %121, %cst_55 [1] : vector<16x128xf32> to vector<16xf32>
    %127 = vector.shape_cast %126 : vector<16xf32> to vector<16x1xf32>
    %cst_56 = arith.constant 1.280000e+02 : f32
    %128 = vector.broadcast %cst_56 : f32 to vector<16x1xf32>
    %129 = arith.divf %127, %128 : vector<16x1xf32>
    %130 = vector.broadcast %129 : vector<16x1xf32> to vector<16x128xf32>
    %131 = arith.subf %121, %130 : vector<16x128xf32>
    %132 = arith.mulf %131, %131 : vector<16x128xf32>
    %cst_57 = arith.constant dense<0.000000e+00> : vector<16xf32>
    %133 = vector.multi_reduction <add>, %132, %cst_57 [1] : vector<16x128xf32> to vector<16xf32>
    %134 = vector.shape_cast %133 : vector<16xf32> to vector<16x1xf32>
    %cst_58 = arith.constant 1.280000e+02 : f32
    %135 = vector.broadcast %cst_58 : f32 to vector<16x1xf32>
    %136 = arith.divf %134, %135 : vector<16x1xf32>
    %137 = vector.broadcast %129 : vector<16x1xf32> to vector<16x128xf32>
    %138 = arith.subf %121, %137 : vector<16x128xf32>
    %cst_59 = arith.constant 9.99999974E-6 : f32
    %139 = vector.broadcast %cst_59 : f32 to vector<16x1xf32>
    %140 = arith.addf %136, %139 : vector<16x1xf32>
    %141 = math.rsqrt %140 : vector<16x1xf32>
    %142 = vector.broadcast %141 : vector<16x1xf32> to vector<16x128xf32>
    %143 = arith.mulf %138, %142 : vector<16x128xf32>
    %144 = vector.shape_cast %123 : vector<128xf32> to vector<1x128xf32>
    %145 = vector.broadcast %144 : vector<1x128xf32> to vector<16x128xf32>
    %146 = arith.mulf %143, %145 : vector<16x128xf32>
    %147 = vector.shape_cast %125 : vector<128xf32> to vector<1x128xf32>
    %148 = vector.broadcast %147 : vector<1x128xf32> to vector<16x128xf32>
    %149 = arith.addf %146, %148 : vector<16x128xf32>
    %150 = arith.truncf %149 : vector<16x128xf32> to vector<16x128xbf16>
    %c0_60 = arith.constant 0 : index
    %c0_61 = arith.constant 0 : index
    %c0_62 = arith.constant 0 : index
    %151 = vector.load %arg16[%c0_60, %c0_61, %c0_62] : memref<1x16x128xbf16, #tpu.memory_space<vmem>>, vector<1x16x128xbf16>
    %152 = vector.shape_cast %151 : vector<1x16x128xbf16> to vector<16x128xbf16>
    %153 = vector.shape_cast %150 : vector<16x128xbf16> to vector<1x16x128xbf16>
    tpu.vector_store %arg16[%c0_60, %c0_61, %c0_62], %153 {strides = array<i32>} : memref<1x16x128xbf16, #tpu.memory_space<vmem>>, vector<1x16x128xbf16>,
    return
  }
  func.func @transform_0(%arg0: i32) -> (i32, i32, i32) {
    %c0_i32 = arith.constant 0 : i32
    %c0_i32_0 = arith.constant 0 : i32
    %c0_i32_1 = arith.constant 0 : i32
    return %arg0, %c0_i32, %c0_i32_0 : i32, i32, i32
  }
  func.func @transform_1(%arg0: i32) -> (i32, i32) {
    %c0_i32 = arith.constant 0 : i32
    %c0_i32_0 = arith.constant 0 : i32
    %c0_i32_1 = arith.constant 0 : i32
    return %c0_i32, %c0_i32_0 : i32, i32
  }
  func.func @transform_2(%arg0: i32) -> (i32, i32) {
    %c0_i32 = arith.constant 0 : i32
    %c0_i32_0 = arith.constant 0 : i32
    %c0_i32_1 = arith.constant 0 : i32
    return %c0_i32, %c0_i32_0 : i32, i32
  }
  func.func @transform_3(%arg0: i32) -> (i32, i32) {
    %c0_i32 = arith.constant 0 : i32
    %c0_i32_0 = arith.constant 0 : i32
    %c0_i32_1 = arith.constant 0 : i32
    return %c0_i32, %c0_i32_0 : i32, i32
  }
  func.func @transform_4(%arg0: i32) -> (i32, i32) {
    %c0_i32 = arith.constant 0 : i32
    %c0_i32_0 = arith.constant 0 : i32
    %c0_i32_1 = arith.constant 0 : i32
    return %c0_i32, %c0_i32_0 : i32, i32
  }
  func.func @transform_5(%arg0: i32) -> (i32, i32) {
    %c0_i32 = arith.constant 0 : i32
    %c0_i32_0 = arith.constant 0 : i32
    %c0_i32_1 = arith.constant 0 : i32
    return %c0_i32, %c0_i32_0 : i32, i32
  }
  func.func @transform_6(%arg0: i32) -> (i32, i32) {
    %c0_i32 = arith.constant 0 : i32
    %c0_i32_0 = arith.constant 0 : i32
    %c0_i32_1 = arith.constant 0 : i32
    return %c0_i32, %c0_i32_0 : i32, i32
  }
  func.func @transform_7(%arg0: i32) -> (i32, i32) {
    %c0_i32 = arith.constant 0 : i32
    %c0_i32_0 = arith.constant 0 : i32
    %c0_i32_1 = arith.constant 0 : i32
    return %c0_i32, %c0_i32_0 : i32, i32
  }
  func.func @transform_8(%arg0: i32) -> (i32, i32) {
    %c0_i32 = arith.constant 0 : i32
    %c0_i32_0 = arith.constant 0 : i32
    %c0_i32_1 = arith.constant 0 : i32
    return %c0_i32, %c0_i32_0 : i32, i32
  }
  func.func @transform_9(%arg0: i32) -> (i32, i32) {
    %c0_i32 = arith.constant 0 : i32
    %c0_i32_0 = arith.constant 0 : i32
    %c0_i32_1 = arith.constant 0 : i32
    return %c0_i32, %c0_i32_0 : i32, i32
  }
  func.func @transform_10(%arg0: i32) -> (i32, i32) {
    %c0_i32 = arith.constant 0 : i32
    %c0_i32_0 = arith.constant 0 : i32
    %c0_i32_1 = arith.constant 0 : i32
    return %c0_i32, %c0_i32_0 : i32, i32
  }
  func.func @transform_11(%arg0: i32) -> (i32, i32) {
    %c0_i32 = arith.constant 0 : i32
    %c0_i32_0 = arith.constant 0 : i32
    %c0_i32_1 = arith.constant 0 : i32
    return %c0_i32, %c0_i32_0 : i32, i32
  }
  func.func @transform_12(%arg0: i32) -> (i32, i32) {
    %c0_i32 = arith.constant 0 : i32
    %c0_i32_0 = arith.constant 0 : i32
    %c0_i32_1 = arith.constant 0 : i32
    return %c0_i32, %c0_i32_0 : i32, i32
  }
  func.func @transform_13(%arg0: i32) -> (i32, i32) {
    %c0_i32 = arith.constant 0 : i32
    %c0_i32_0 = arith.constant 0 : i32
    %c0_i32_1 = arith.constant 0 : i32
    return %c0_i32, %c0_i32_0 : i32, i32
  }
  func.func @transform_14(%arg0: i32) -> (i32, i32) {
    %c0_i32 = arith.constant 0 : i32
    %c0_i32_0 = arith.constant 0 : i32
    %c0_i32_1 = arith.constant 0 : i32
    return %c0_i32, %c0_i32_0 : i32, i32
  }
  func.func @transform_15(%arg0: i32) -> (i32, i32, i32) {
    %c0_i32 = arith.constant 0 : i32
    %c0_i32_0 = arith.constant 0 : i32
    %c0_i32_1 = arith.constant 0 : i32
    return %arg0, %c0_i32, %c0_i32_0 : i32, i32, i32
  }
}

</mosaic_0001>

<llo_original>
// kernel: tpu_custom_call.1
$region0: #{tpu_custom_call.1}
  #allocation0 [shape = 'u32[]', space=smem, size = 0x4, offset = 0x4, fixed_abs, tag = 'smem constant byte address 0x4 - core index']
  #allocation1 [shape = 'u32[72,128]{1,0:T(1,128)}', space=vmem, size = 0x9000, scoped, tag = 'internal scratch']
  %s0 = inlined_call_operand.hbm [shape: f32[2,16,128], index: 0, kind: input, shape index: {}]
  %s1 = inlined_call_operand.hbm [shape: f32[1,128], index: 1, kind: input, shape index: {}]
  %s2 = inlined_call_operand.vmem [shape: f32[1,128], index: 2, kind: input, shape index: {}]
  %s3 = inlined_call_operand.hbm [shape: bf16[128,128], index: 3, kind: input, shape index: {}]
  %s4 = inlined_call_operand.hbm [shape: bf16[128,128], index: 4, kind: input, shape index: {}]
  %s5 = inlined_call_operand.hbm [shape: bf16[128,128], index: 5, kind: input, shape index: {}]
  %s6 = inlined_call_operand.hbm [shape: bf16[128,128], index: 6, kind: input, shape index: {}]
  %s7 = inlined_call_operand.vmem [shape: f32[1,128], index: 7, kind: input, shape index: {}]
  %s8 = inlined_call_operand.vmem [shape: f32[1,128], index: 8, kind: input, shape index: {}]
  %s9 = inlined_call_operand.hbm [shape: bf16[128,256], index: 9, kind: input, shape index: {}]
  %s10 = inlined_call_operand.vmem [shape: f32[1,256], index: 10, kind: input, shape index: {}]
  %s11 = inlined_call_operand.hbm [shape: bf16[256,128], index: 11, kind: input, shape index: {}]
  %s12 = inlined_call_operand.vmem [shape: f32[1,128], index: 12, kind: input, shape index: {}]
  %s13 = inlined_call_operand.vmem [shape: f32[1,128], index: 13, kind: input, shape index: {}]
  %s14 = inlined_call_operand.vmem [shape: f32[1,128], index: 14, kind: input, shape index: {}]
  %s15 = inlined_call_operand.hbm [shape: bf16[2,16,128], index: 15, kind: output, shape index: {}]
  %s16 = sld [smem:[#allocation0]]
  $region125: #{tpu_custom_call.1} parent=0
    _
  %s18 = ssub.s32 1, %s16
  %s19 = scalar_select 0, %s18, %s16
  $region1: #{tpu_custom_call.1} parent=0
    #allocation2 [shape = 'u8[16384]{0}', space=vmem, size = 0x4000, scoped, tag = 'input window, operand 0']
    #allocation3 [shape = 's32[2]{0}', space=sflag, size = 0x8, scoped, tag = 'scoped memory for tpu_custom_call.1']
    #allocation4 [shape = 's32[2]{0}', space=sflag, size = 0x8, scoped, tag = 'scoped memory for tpu_custom_call.1']
    #allocation5 [shape = 'u8[512]{0}', space=vmem, size = 0x400, scoped, tag = 'input window, operand 1, single buffered']
    #allocation6 [shape = 's32[1]{0}', space=sflag, size = 0x4, scoped, tag = 'scoped memory for tpu_custom_call.1']
    #allocation7 [shape = 'u8[32768]{0}', space=vmem, size = 0x8000, scoped, tag = 'input window, operand 3, single buffered']
    #allocation8 [shape = 'u8[32768]{0}', space=vmem, size = 0x8000, scoped, tag = 'input window, operand 4, single buffered']
    #allocation9 [shape = 's32[1]{0}', space=sflag, size = 0x4, scoped, tag = 'scoped memory for tpu_custom_call.1']
    #allocation10 [shape = 'u8[32768]{0}', space=vmem, size = 0x8000, scoped, tag = 'input window, operand 5, single buffered']
    #allocation11 [shape = 'u8[32768]{0}', space=vmem, size = 0x8000, scoped, tag = 'input window, operand 6, single buffered']
    #allocation12 [shape = 's32[1]{0}', space=sflag, size = 0x4, scoped, tag = 'scoped memory for tpu_custom_call.1']
    #allocation13 [shape = 'u8[65536]{0}', space=vmem, size = 0x10000, scoped, tag = 'input window, operand 9, single buffered']
    #allocation14 [shape = 'u8[65536]{0}', space=vmem, size = 0x10000, scoped, tag = 'input window, operand 11, single buffered']
    #allocation15 [shape = 's32[1]{0}', space=sflag, size = 0x4, scoped, tag = 'scoped memory for tpu_custom_call.1']
    #allocation16 [shape = 'u8[8192]{0}', space=vmem, size = 0x2000, scoped, tag = 'output window, operand 0']
    %20 = vsyncpa [#allocation3], 0
    %s21 = scalar_lea.sflag [#allocation3], 1
    %22 = vsyncpa %s21, 0
    %23 = vsyncpa [#allocation6], 0
    %24 = vsyncpa [#allocation9], 0
    %25 = vsyncpa [#allocation12], 0
    %26 = vsyncpa [#allocation15], 0
    %27 = vsyncpa [#allocation4], 0
    %s28 = scalar_lea.sflag [#allocation4], 1
    %29 = vsyncpa %s28, 0
    loop: start=0, step=1, limit=4
    $region2: #{tpu_custom_call.1} parent=1 // loop_pre_header
      _
    $region3: #{tpu_custom_call.1} parent=1 // loop_header
      %s31 = sphi 0, %s35
      %p32 = scmp.ge.s32.totalorder %s31, 4
      %s41 = sphi 0, %s43
      %s44 = sphi 0, %s41
      %s45 = sphi 0, %s44
      %s61 = sphi 0, %s45
      %s65 = sphi 0, %s65
      %s67 = sphi 0, %s65
      %s68 = sphi 0, %s67
      %s82 = sphi 0, %s68
      %s86 = sphi 0, %s86
      %s88 = sphi 0, %s86
      %s89 = sphi 0, %s88
      %s103 = sphi 0, %s89
      %s107 = sphi 0, %s107
      %s109 = sphi 0, %s107
      %s110 = sphi 0, %s109
      %s124 = sphi 0, %s110
      %s128 = sphi 0, %s128
      %s130 = sphi 0, %s128
      %s131 = sphi 0, %s130
      %s145 = sphi 0, %s131
      %s149 = sphi 0, %s149
      %s151 = sphi 0, %s149
      %s152 = sphi 0, %s151
      %s166 = sphi 0, %s152
      %s170 = sphi 0, %s170
      %s172 = sphi 0, %s170
      %s173 = sphi 0, %s172
      %s187 = sphi 0, %s173
      %s191 = sphi 0, %s191
      %s193 = sphi 0, %s191
      %s194 = sphi 0, %s193
      %s208 = sphi 0, %s194
      %s212 = sphi 0, %s212
      %s214 = sphi 0, %s212
      %s215 = sphi 0, %s214
      %s229 = sphi 0, %s215
      %s233 = sphi 0, %s233
      %s235 = sphi 0, %s233
      %s236 = sphi 0, %s235
      %s250 = sphi 0, %s236
      %s254 = sphi 0, %s254
      %s256 = sphi 0, %s254
      %s257 = sphi 0, %s256
      %s271 = sphi 0, %s257
      %s275 = sphi 0, %s275
      %s277 = sphi 0, %s275
      %s278 = sphi 0, %s277
      %s292 = sphi 0, %s278
      %s296 = sphi 0, %s296
      %s298 = sphi 0, %s296
      %s299 = sphi 0, %s298
      %s313 = sphi 0, %s299
      %s317 = sphi 0, %s317
      %s319 = sphi 0, %s317
      %s320 = sphi 0, %s319
      %s334 = sphi 0, %s320
      %s338 = sphi 0, %s338
      %s340 = sphi 0, %s338
      %s341 = sphi 0, %s340
      %s355 = sphi 0, %s341
      %s361 = sphi 0, %s363
      %s364 = sphi 0, %s361
      %s365 = sphi 0, %s364
      %s381 = sphi 0, %s365
    $region4: #{tpu_custom_call.1} parent=1 // loop_header_branch
      %34 = sbr.rel (%p32) target = $region8
    $region5: #{tpu_custom_call.1} parent=1 // loop_body
      %s36 = ssub.s32 %s31, 1
      %s37 = ssub.s32 %s31, 2
      %s38 = sadd.s32 %s31, 1
      %s39 = ssub.s32 %s31, %s38
      %p40 = scmp.eq.s32.totalorder %s39, 0
      %s42 = sadd.s32 %s41, 1
      %s43 = scalar_select %p40, %s41, %s42
      %p46 = pneg %p40
      %p47 = scmp.eq.s32.totalorder %s31, 1
      %p48 = por %p46, %p47
      %p49 = scmp.ne.s32.totalorder %s41, %s44
      %p50 = scmp.eq.s32.totalorder %s31, 0
      %p51 = por %p49, %p50
      %p52 = scmp.ne.s32.totalorder %s41, %s44
      %p53 = scmp.eq.s32.totalorder %s36, 1
      %p54 = por %p52, %p53
      %p55 = scmp.ne.s32.totalorder %s44, %s45
      %p56 = scmp.eq.s32.totalorder %s36, 0
      %p57 = por %p55, %p56
      %p58 = scmp.ne.s32.totalorder %s44, %s45
      %p59 = scmp.eq.s32.totalorder %s37, 1
      %p60 = por %p58, %p59
      %p62 = scmp.ne.s32.totalorder %s45, %s61
      %p63 = scmp.eq.s32.totalorder %s37, 0
      %p64 = por %p62, %p63
      %s66 = sadd.s32 %s65, 1
      %p69 = scmp.eq.s32.totalorder %s31, 1
      %p70 = scmp.ne.s32.totalorder %s65, %s67
      %p71 = scmp.eq.s32.totalorder %s31, 0
      %p72 = por %p70, %p71
      %p73 = scmp.ne.s32.totalorder %s65, %s67
      %p74 = scmp.eq.s32.totalorder %s36, 1
      %p75 = por %p73, %p74
      %p76 = scmp.ne.s32.totalorder %s67, %s68
      %p77 = scmp.eq.s32.totalorder %s36, 0
      %p78 = por %p76, %p77
      %p79 = scmp.ne.s32.totalorder %s67, %s68
      %p80 = scmp.eq.s32.totalorder %s37, 1
      %p81 = por %p79, %p80
      %p83 = scmp.ne.s32.totalorder %s68, %s82
      %p84 = scmp.eq.s32.totalorder %s37, 0
      %p85 = por %p83, %p84
      %s87 = sadd.s32 %s86, 1
      %p90 = scmp.eq.s32.totalorder %s31, 1
      %p91 = scmp.ne.s32.totalorder %s86, %s88
      %p92 = scmp.eq.s32.totalorder %s31, 0
      %p93 = por %p91, %p92
      %p94 = scmp.ne.s32.totalorder %s86, %s88
      %p95 = scmp.eq.s32.totalorder %s36, 1
      %p96 = por %p94, %p95
      %p97 = scmp.ne.s32.totalorder %s88, %s89
      %p98 = scmp.eq.s32.totalorder %s36, 0
      %p99 = por %p97, %p98
      %p100 = scmp.ne.s32.totalorder %s88, %s89
      %p101 = scmp.eq.s32.totalorder %s37, 1
      %p102 = por %p100, %p101
      %p104 = scmp.ne.s32.totalorder %s89, %s103
      %p105 = scmp.eq.s32.totalorder %s37, 0
      %p106 = por %p104, %p105
      %s108 = sadd.s32 %s107, 1
      %p111 = scmp.eq.s32.totalorder %s31, 1
      %p112 = scmp.ne.s32.totalorder %s107, %s109
      %p113 = scmp.eq.s32.totalorder %s31, 0
      %p114 = por %p112, %p113
      %p115 = scmp.ne.s32.totalorder %s107, %s109
      %p116 = scmp.eq.s32.totalorder %s36, 1
      %p117 = por %p115, %p116
      %p118 = scmp.ne.s32.totalorder %s109, %s110
      %p119 = scmp.eq.s32.totalorder %s36, 0
      %p120 = por %p118, %p119
      %p121 = scmp.ne.s32.totalorder %s109, %s110
      %p122 = scmp.eq.s32.totalorder %s37, 1
      %p123 = por %p121, %p122
      %p125 = scmp.ne.s32.totalorder %s110, %s124
      %p126 = scmp.eq.s32.totalorder %s37, 0
      %p127 = por %p125, %p126
      %s129 = sadd.s32 %s128, 1
      %p132 = scmp.eq.s32.totalorder %s31, 1
      %p133 = scmp.ne.s32.totalorder %s128, %s130
      %p134 = scmp.eq.s32.totalorder %s31, 0
      %p135 = por %p133, %p134
      %p136 = scmp.ne.s32.totalorder %s128, %s130
      %p137 = scmp.eq.s32.totalorder %s36, 1
      %p138 = por %p136, %p137
      %p139 = scmp.ne.s32.totalorder %s130, %s131
      %p140 = scmp.eq.s32.totalorder %s36, 0
      %p141 = por %p139, %p140
      %p142 = scmp.ne.s32.totalorder %s130, %s131
      %p143 = scmp.eq.s32.totalorder %s37, 1
      %p144 = por %p142, %p143
      %p146 = scmp.ne.s32.totalorder %s131, %s145
      %p147 = scmp.eq.s32.totalorder %s37, 0
      %p148 = por %p146, %p147
      %s150 = sadd.s32 %s149, 1
      %p153 = scmp.eq.s32.totalorder %s31, 1
      %p154 = scmp.ne.s32.totalorder %s149, %s151
      %p155 = scmp.eq.s32.totalorder %s31, 0
      %p156 = por %p154, %p155
      %p157 = scmp.ne.s32.totalorder %s149, %s151
      %p158 = scmp.eq.s32.totalorder %s36, 1
      %p159 = por %p157, %p158
      %p160 = scmp.ne.s32.totalorder %s151, %s152
      %p161 = scmp.eq.s32.totalorder %s36, 0
      %p162 = por %p160, %p161
      %p163 = scmp.ne.s32.totalorder %s151, %s152
      %p164 = scmp.eq.s32.totalorder %s37, 1
      %p165 = por %p163, %p164
      %p167 = scmp.ne.s32.totalorder %s152, %s166
      %p168 = scmp.eq.s32.totalorder %s37, 0
      %p169 = por %p167, %p168
      %s171 = sadd.s32 %s170, 1
      %p174 = scmp.eq.s32.totalorder %s31, 1
      %p175 = scmp.ne.s32.totalorder %s170, %s172
      %p176 = scmp.eq.s32.totalorder %s31, 0
      %p177 = por %p175, %p176
      %p178 = scmp.ne.s32.totalorder %s170, %s172
      %p179 = scmp.eq.s32.totalorder %s36, 1
      %p180 = por %p178, %p179
      %p181 = scmp.ne.s32.totalorder %s172, %s173
      %p182 = scmp.eq.s32.totalorder %s36, 0
      %p183 = por %p181, %p182
      %p184 = scmp.ne.s32.totalorder %s172, %s173
      %p185 = scmp.eq.s32.totalorder %s37, 1
      %p186 = por %p184, %p185
      %p188 = scmp.ne.s32.totalorder %s173, %s187
      %p189 = scmp.eq.s32.totalorder %s37, 0
      %p190 = por %p188, %p189
      %s192 = sadd.s32 %s191, 1
      %p195 = scmp.eq.s32.totalorder %s31, 1
      %p196 = scmp.ne.s32.totalorder %s191, %s193
      %p197 = scmp.eq.s32.totalorder %s31, 0
      %p198 = por %p196, %p197
      %p199 = scmp.ne.s32.totalorder %s191, %s193
      %p200 = scmp.eq.s32.totalorder %s36, 1
      %p201 = por %p199, %p200
      %p202 = scmp.ne.s32.totalorder %s193, %s194
      %p203 = scmp.eq.s32.totalorder %s36, 0
      %p204 = por %p202, %p203
      %p205 = scmp.ne.s32.totalorder %s193, %s194
      %p206 = scmp.eq.s32.totalorder %s37, 1
      %p207 = por %p205, %p206
      %p209 = scmp.ne.s32.totalorder %s194, %s208
      %p210 = scmp.eq.s32.totalorder %s37, 0
      %p211 = por %p209, %p210
      %s213 = sadd.s32 %s212, 1
      %p216 = scmp.eq.s32.totalorder %s31, 1
      %p217 = scmp.ne.s32.totalorder %s212, %s214
      %p218 = scmp.eq.s32.totalorder %s31, 0
      %p219 = por %p217, %p218
      %p220 = scmp.ne.s32.totalorder %s212, %s214
      %p221 = scmp.eq.s32.totalorder %s36, 1
      %p222 = por %p220, %p221
      %p223 = scmp.ne.s32.totalorder %s214, %s215
      %p224 = scmp.eq.s32.totalorder %s36, 0
      %p225 = por %p223, %p224
      %p226 = scmp.ne.s32.totalorder %s214, %s215
      %p227 = scmp.eq.s32.totalorder %s37, 1
      %p228 = por %p226, %p227
      %p230 = scmp.ne.s32.totalorder %s215, %s229
      %p231 = scmp.eq.s32.totalorder %s37, 0
      %p232 = por %p230, %p231
      %s234 = sadd.s32 %s233, 1
      %p237 = scmp.eq.s32.totalorder %s31, 1
      %p238 = scmp.ne.s32.totalorder %s233, %s235
      %p239 = scmp.eq.s32.totalorder %s31, 0
      %p240 = por %p238, %p239
      %p241 = scmp.ne.s32.totalorder %s233, %s235
      %p242 = scmp.eq.s32.totalorder %s36, 1
      %p243 = por %p241, %p242
      %p244 = scmp.ne.s32.totalorder %s235, %s236
      %p245 = scmp.eq.s32.totalorder %s36, 0
      %p246 = por %p244, %p245
      %p247 = scmp.ne.s32.totalorder %s235, %s236
      %p248 = scmp.eq.s32.totalorder %s37, 1
      %p249 = por %p247, %p248
      %p251 = scmp.ne.s32.totalorder %s236, %s250
      %p252 = scmp.eq.s32.totalorder %s37, 0
      %p253 = por %p251, %p252
      %s255 = sadd.s32 %s254, 1
      %p258 = scmp.eq.s32.totalorder %s31, 1
      %p259 = scmp.ne.s32.totalorder %s254, %s256
      %p260 = scmp.eq.s32.totalorder %s31, 0
      %p261 = por %p259, %p260
      %p262 = scmp.ne.s32.totalorder %s254, %s256
      %p263 = scmp.eq.s32.totalorder %s36, 1
      %p264 = por %p262, %p263
      %p265 = scmp.ne.s32.totalorder %s256, %s257
      %p266 = scmp.eq.s32.totalorder %s36, 0
      %p267 = por %p265, %p266
      %p268 = scmp.ne.s32.totalorder %s256, %s257
      %p269 = scmp.eq.s32.totalorder %s37, 1
      %p270 = por %p268, %p269
      %p272 = scmp.ne.s32.totalorder %s257, %s271
      %p273 = scmp.eq.s32.totalorder %s37, 0
      %p274 = por %p272, %p273
      %s276 = sadd.s32 %s275, 1
      %p279 = scmp.eq.s32.totalorder %s31, 1
      %p280 = scmp.ne.s32.totalorder %s275, %s277
      %p281 = scmp.eq.s32.totalorder %s31, 0
      %p282 = por %p280, %p281
      %p283 = scmp.ne.s32.totalorder %s275, %s277
      %p284 = scmp.eq.s32.totalorder %s36, 1
      %p285 = por %p283, %p284
      %p286 = scmp.ne.s32.totalorder %s277, %s278
      %p287 = scmp.eq.s32.totalorder %s36, 0
      %p288 = por %p286, %p287
      %p289 = scmp.ne.s32.totalorder %s277, %s278
      %p290 = scmp.eq.s32.totalorder %s37, 1
      %p291 = por %p289, %p290
      %p293 = scmp.ne.s32.totalorder %s278, %s292
      %p294 = scmp.eq.s32.totalorder %s37, 0
      %p295 = por %p293, %p294
      %s297 = sadd.s32 %s296, 1
      %p300 = scmp.eq.s32.totalorder %s31, 1
      %p301 = scmp.ne.s32.totalorder %s296, %s298
      %p302 = scmp.eq.s32.totalorder %s31, 0
      %p303 = por %p301, %p302
      %p304 = scmp.ne.s32.totalorder %s296, %s298
      %p305 = scmp.eq.s32.totalorder %s36, 1
      %p306 = por %p304, %p305
      %p307 = scmp.ne.s32.totalorder %s298, %s299
      %p308 = scmp.eq.s32.totalorder %s36, 0
      %p309 = por %p307, %p308
      %p310 = scmp.ne.s32.totalorder %s298, %s299
      %p311 = scmp.eq.s32.totalorder %s37, 1
      %p312 = por %p310, %p311
      %p314 = scmp.ne.s32.totalorder %s299, %s313
      %p315 = scmp.eq.s32.totalorder %s37, 0
      %p316 = por %p314, %p315
      %s318 = sadd.s32 %s317, 1
      %p321 = scmp.eq.s32.totalorder %s31, 1
      %p322 = scmp.ne.s32.totalorder %s317, %s319
      %p323 = scmp.eq.s32.totalorder %s31, 0
      %p324 = por %p322, %p323
      %p325 = scmp.ne.s32.totalorder %s317, %s319
      %p326 = scmp.eq.s32.totalorder %s36, 1
      %p327 = por %p325, %p326
      %p328 = scmp.ne.s32.totalorder %s319, %s320
      %p329 = scmp.eq.s32.totalorder %s36, 0
      %p330 = por %p328, %p329
      %p331 = scmp.ne.s32.totalorder %s319, %s320
      %p332 = scmp.eq.s32.totalorder %s37, 1
      %p333 = por %p331, %p332
      %p335 = scmp.ne.s32.totalorder %s320, %s334
      %p336 = scmp.eq.s32.totalorder %s37, 0
      %p337 = por %p335, %p336
      %s339 = sadd.s32 %s338, 1
      %p342 = scmp.eq.s32.totalorder %s31, 1
      %p343 = scmp.ne.s32.totalorder %s338, %s340
      %p344 = scmp.eq.s32.totalorder %s31, 0
      %p345 = por %p343, %p344
      %p346 = scmp.ne.s32.totalorder %s338, %s340
      %p347 = scmp.eq.s32.totalorder %s36, 1
      %p348 = por %p346, %p347
      %p349 = scmp.ne.s32.totalorder %s340, %s341
      %p350 = scmp.eq.s32.totalorder %s36, 0
      %p351 = por %p349, %p350
      %p352 = scmp.ne.s32.totalorder %s340, %s341
      %p353 = scmp.eq.s32.totalorder %s37, 1
      %p354 = por %p352, %p353
      %p356 = scmp.ne.s32.totalorder %s341, %s355
      %p357 = scmp.eq.s32.totalorder %s37, 0
      %p358 = por %p356, %p357
      %s359 = ssub.s32 %s31, %s38
      %p360 = scmp.eq.s32.totalorder %s359, 0
      %s362 = sadd.s32 %s361, 1
      %s363 = scalar_select %p360, %s361, %s362
      %p366 = pneg %p360
      %p367 = scmp.eq.s32.totalorder %s31, 1
      %p368 = por %p366, %p367
      %p369 = scmp.ne.s32.totalorder %s361, %s364
      %p370 = scmp.eq.s32.totalorder %s31, 0
      %p371 = por %p369, %p370
      %p372 = scmp.ne.s32.totalorder %s361, %s364
      %p373 = scmp.eq.s32.totalorder %s36, 1
      %p374 = por %p372, %p373
      %p375 = scmp.ne.s32.totalorder %s364, %s365
      %p376 = scmp.eq.s32.totalorder %s36, 0
      %p377 = por %p375, %p376
      %p378 = scmp.ne.s32.totalorder %s364, %s365
      %p379 = scmp.eq.s32.totalorder %s37, 1
      %p380 = por %p378, %p379
      %p382 = scmp.ne.s32.totalorder %s365, %s381
      %p383 = scmp.eq.s32.totalorder %s37, 0
      %p384 = por %p382, %p383
      %p385 = scmp.le.s32.totalorder 1, %s31
      %p386 = scmp.lt.s32.totalorder %s31, 3
      %p387 = pnand %p385, %p386
      %p388 = pneg %p387
      // Predicated region
      $region9: #{tpu_custom_call.1} parent=5 // pred_check
        _
      $region10: #{tpu_custom_call.1} parent=5 // pred_check_branch
        %390 = sbr.rel (%p387) target = $region12
      $region11: #{tpu_custom_call.1} parent=5 // pred_region
        %s391 = ssub.s32 %s31, 1
        // Predicated region
        $region13: #{tpu_custom_call.1} parent=11 // pred_check
          %p392 = pneg %p78
        $region14: #{tpu_custom_call.1} parent=11 // pred_check_branch
          %394 = sbr.rel (%p392) target = $region16
        $region15: #{tpu_custom_call.1} parent=11 // pred_region
          %396 = vsyncadd [#allocation6], 0
          %s398 = sshll.u32 %s1, 4
          %s399 = int_to_ptr.hbm [resolvable:$true] %s398
          %s400 = sshll.u32 [#allocation5], 4
          %s401 = int_to_ptr.vmem [resolvable:$true] %s400
          %403 = dma.hbm_to_vmem [thread:$0]  %s399, 16, %s401, [#allocation6]
        $region16: #{tpu_custom_call.1} parent=11 // pred_fallthru
          _
        // Predicated region
        $region17: #{tpu_custom_call.1} parent=11 // pred_check
          %p404 = pneg %p99
        $region18: #{tpu_custom_call.1} parent=11 // pred_check_branch
          %406 = sbr.rel (%p404) target = $region20
        $region19: #{tpu_custom_call.1} parent=11 // pred_region
          _
        $region20: #{tpu_custom_call.1} parent=11 // pred_fallthru
          _
        // Predicated region
        $region21: #{tpu_custom_call.1} parent=11 // pred_check
          %p407 = pneg %p120
        $region22: #{tpu_custom_call.1} parent=11 // pred_check_branch
          %409 = sbr.rel (%p407) target = $region24
        $region23: #{tpu_custom_call.1} parent=11 // pred_region
          %411 = vsyncadd [#allocation6], 0
          %s412 = sshll.u32 %s3, 4
          %s413 = int_to_ptr.hbm [resolvable:$true] %s412
          %s414 = sshll.u32 [#allocation7], 4
          %s415 = int_to_ptr.vmem [resolvable:$true] %s414
          %420 = dma.hbm_to_vmem [thread:$0]  %s413, 1024, %s415, [#allocation6], 64, 64, 4
        $region24: #{tpu_custom_call.1} parent=11 // pred_fallthru
          _
        // Predicated region
        $region25: #{tpu_custom_call.1} parent=11 // pred_check
          %p421 = pneg %p141
        $region26: #{tpu_custom_call.1} parent=11 // pred_check_branch
          %423 = sbr.rel (%p421) target = $region28
        $region27: #{tpu_custom_call.1} parent=11 // pred_region
          %425 = vsyncadd [#allocation9], 0
          %s426 = sshll.u32 %s4, 4
          %s427 = int_to_ptr.hbm [resolvable:$true] %s426
          %s428 = sshll.u32 [#allocation8], 4
          %s429 = int_to_ptr.vmem [resolvable:$true] %s428
          %434 = dma.hbm_to_vmem [thread:$0]  %s427, 1024, %s429, [#allocation9], 64, 64, 4
        $region28: #{tpu_custom_call.1} parent=11 // pred_fallthru
          _
        // Predicated region
        $region29: #{tpu_custom_call.1} parent=11 // pred_check
          %p435 = pneg %p162
        $region30: #{tpu_custom_call.1} parent=11 // pred_check_branch
          %437 = sbr.rel (%p435) target = $region32
        $region31: #{tpu_custom_call.1} parent=11 // pred_region
          %439 = vsyncadd [#allocation9], 0
          %s440 = sshll.u32 %s5, 4
          %s441 = int_to_ptr.hbm [resolvable:$true] %s440
          %s442 = sshll.u32 [#allocation10], 4
          %s443 = int_to_ptr.vmem [resolvable:$true] %s442
          %448 = dma.hbm_to_vmem [thread:$0]  %s441, 1024, %s443, [#allocation9], 64, 64, 4
        $region32: #{tpu_custom_call.1} parent=11 // pred_fallthru
          _
        // Predicated region
        $region33: #{tpu_custom_call.1} parent=11 // pred_check
          %p449 = pneg %p183
        $region34: #{tpu_custom_call.1} parent=11 // pred_check_branch
          %451 = sbr.rel (%p449) target = $region36
        $region35: #{tpu_custom_call.1} parent=11 // pred_region
          %453 = vsyncadd [#allocation12], 0
          %s454 = sshll.u32 %s6, 4
          %s455 = int_to_ptr.hbm [resolvable:$true] %s454
          %s456 = sshll.u32 [#allocation11], 4
          %s457 = int_to_ptr.vmem [resolvable:$true] %s456
          %462 = dma.hbm_to_vmem [thread:$0]  %s455, 1024, %s457, [#allocation12], 64, 64, 4
        $region36: #{tpu_custom_call.1} parent=11 // pred_fallthru
          _
        // Predicated region
        $region37: #{tpu_custom_call.1} parent=11 // pred_check
          %p463 = pneg %p204
        $region38: #{tpu_custom_call.1} parent=11 // pred_check_branch
          %465 = sbr.rel (%p463) target = $region40
        $region39: #{tpu_custom_call.1} parent=11 // pred_region
          _
        $region40: #{tpu_custom_call.1} parent=11 // pred_fallthru
          _
        // Predicated region
        $region41: #{tpu_custom_call.1} parent=11 // pred_check
          %p466 = pneg %p225
        $region42: #{tpu_custom_call.1} parent=11 // pred_check_branch
          %468 = sbr.rel (%p466) target = $region44
        $region43: #{tpu_custom_call.1} parent=11 // pred_region
          _
        $region44: #{tpu_custom_call.1} parent=11 // pred_fallthru
          _
        // Predicated region
        $region45: #{tpu_custom_call.1} parent=11 // pred_check
          %p469 = pneg %p246
        $region46: #{tpu_custom_call.1} parent=11 // pred_check_branch
          %471 = sbr.rel (%p469) target = $region48
        $region47: #{tpu_custom_call.1} parent=11 // pred_region
          %473 = vsyncadd [#allocation12], 0
          %s474 = sshll.u32 %s9, 4
          %s475 = int_to_ptr.hbm [resolvable:$true] %s474
          %s476 = sshll.u32 [#allocation13], 4
          %s477 = int_to_ptr.vmem [resolvable:$true] %s476
          %482 = dma.hbm_to_vmem [thread:$0]  %s475, 2048, %s477, [#allocation12], 128, 128, 8
        $region48: #{tpu_custom_call.1} parent=11 // pred_fallthru
          _
        // Predicated region
        $region49: #{tpu_custom_call.1} parent=11 // pred_check
          %p483 = pneg %p267
        $region50: #{tpu_custom_call.1} parent=11 // pred_check_branch
          %485 = sbr.rel (%p483) target = $region52
        $region51: #{tpu_custom_call.1} parent=11 // pred_region
          _
        $region52: #{tpu_custom_call.1} parent=11 // pred_fallthru
          _
        // Predicated region
        $region53: #{tpu_custom_call.1} parent=11 // pred_check
          %p486 = pneg %p288
        $region54: #{tpu_custom_call.1} parent=11 // pred_check_branch
          %488 = sbr.rel (%p486) target = $region56
        $region55: #{tpu_custom_call.1} parent=11 // pred_region
          %490 = vsyncadd [#allocation15], 0
          %s491 = sshll.u32 %s11, 4
          %s492 = int_to_ptr.hbm [resolvable:$true] %s491
          %s493 = sshll.u32 [#allocation14], 4
          %s494 = int_to_ptr.vmem [resolvable:$true] %s493
          %499 = dma.hbm_to_vmem [thread:$0]  %s492, 2048, %s494, [#allocation15], 64, 64, 4
        $region56: #{tpu_custom_call.1} parent=11 // pred_fallthru
          _
        // Predicated region
        $region57: #{tpu_custom_call.1} parent=11 // pred_check
          %p500 = pneg %p309
        $region58: #{tpu_custom_call.1} parent=11 // pred_check_branch
          %502 = sbr.rel (%p500) target = $region60
        $region59: #{tpu_custom_call.1} parent=11 // pred_region
          _
        $region60: #{tpu_custom_call.1} parent=11 // pred_fallthru
          _
        // Predicated region
        $region61: #{tpu_custom_call.1} parent=11 // pred_check
          %p503 = pneg %p330
        $region62: #{tpu_custom_call.1} parent=11 // pred_check_branch
          %505 = sbr.rel (%p503) target = $region64
        $region63: #{tpu_custom_call.1} parent=11 // pred_region
          _
        $region64: #{tpu_custom_call.1} parent=11 // pred_fallthru
          _
        // Predicated region
        $region65: #{tpu_custom_call.1} parent=11 // pred_check
          %p506 = pneg %p351
        $region66: #{tpu_custom_call.1} parent=11 // pred_check_branch
          %508 = sbr.rel (%p506) target = $region68
        $region67: #{tpu_custom_call.1} parent=11 // pred_region
          _
        $region68: #{tpu_custom_call.1} parent=11 // pred_fallthru
          _
      $region12: #{tpu_custom_call.1} parent=5 // pred_fallthru
        _
      %p509 = scmp.lt.s32.totalorder %s31, 2
      // Predicated region
      $region69: #{tpu_custom_call.1} parent=5 // pred_check
        %p510 = pneg %p509
      $region70: #{tpu_custom_call.1} parent=5 // pred_check_branch
        %512 = sbr.rel (%p510) target = $region72
      $region71: #{tpu_custom_call.1} parent=5 // pred_region
        // Predicated region
        $region73: #{tpu_custom_call.1} parent=71 // pred_check
          %p513 = pneg %p51
        $region74: #{tpu_custom_call.1} parent=71 // pred_check_branch
          %515 = sbr.rel (%p513) target = $region76
        $region75: #{tpu_custom_call.1} parent=71 // pred_region
          %s516 = sand.u32 %s41, 1
          %s517 = scalar_lea.sflag [#allocation3], %s516
          %s518 = sand.u32 %s41, 1
          %s519 = smul.addr %s518, 16
          %s520 = scalar_lea.vmem [#allocation2], %s519
          %522 = vsyncadd %s517, 0
          %s523 = smul.addr %s31, 2
          %s524 = smul.addr %s523, 8
          %s525 = scalar_lea.hbm %s0, %s524
          %s526 = sshll.u32 %s525, 4
          %s527 = int_to_ptr.hbm [resolvable:$true] %s526
          %s528 = sshll.u32 %s520, 4
          %s529 = int_to_ptr.vmem [resolvable:$true] %s528
          %534 = dma.hbm_to_vmem [thread:$0]  %s527, 256, %s529, %s517, 128, 128, 8
        $region76: #{tpu_custom_call.1} parent=71 // pred_fallthru
          _
      $region72: #{tpu_custom_call.1} parent=5 // pred_fallthru
        _
      %p535 = scmp.le.s32.totalorder 1, %s31
      %p536 = scmp.lt.s32.totalorder %s31, 3
      %p537 = pnand %p535, %p536
      %p538 = pneg %p537
      // Predicated region
      $region77: #{tpu_custom_call.1} parent=5 // pred_check
        _
      $region78: #{tpu_custom_call.1} parent=5 // pred_check_branch
        %540 = sbr.rel (%p537) target = $region80
      $region79: #{tpu_custom_call.1} parent=5 // pred_region
        %s541 = ssub.s32 %s31, 1
        %s542 = sand.u32 %s44, 1
        %s543 = scalar_lea.sflag [#allocation3], %s542
        %s544 = sand.u32 %s44, 1
        %s545 = smul.addr %s544, 16
        %s546 = scalar_lea.vmem [#allocation2], %s545
        // Predicated region
        $region81: #{tpu_custom_call.1} parent=79 // pred_check
          %p547 = pneg %p57
        $region82: #{tpu_custom_call.1} parent=79 // pred_check_branch
          %549 = sbr.rel (%p547) target = $region84
        $region83: #{tpu_custom_call.1} parent=79 // pred_region
          %551 = dma.done %s543, 256
        $region84: #{tpu_custom_call.1} parent=79 // pred_fallthru
          _
        // Predicated region
        $region85: #{tpu_custom_call.1} parent=79 // pred_check
          %p552 = pneg %p78
        $region86: #{tpu_custom_call.1} parent=79 // pred_check_branch
          %554 = sbr.rel (%p552) target = $region88
        $region87: #{tpu_custom_call.1} parent=79 // pred_region
          %556 = dma.done [#allocation6], 16
        $region88: #{tpu_custom_call.1} parent=79 // pred_fallthru
          _
        // Predicated region
        $region89: #{tpu_custom_call.1} parent=79 // pred_check
          %p557 = pneg %p120
        $region90: #{tpu_custom_call.1} parent=79 // pred_check_branch
          %559 = sbr.rel (%p557) target = $region92
        $region91: #{tpu_custom_call.1} parent=79 // pred_region
          %561 = dma.done [#allocation6], 1024
        $region92: #{tpu_custom_call.1} parent=79 // pred_fallthru
          _
        // Predicated region
        $region93: #{tpu_custom_call.1} parent=79 // pred_check
          %p562 = pneg %p141
        $region94: #{tpu_custom_call.1} parent=79 // pred_check_branch
          %564 = sbr.rel (%p562) target = $region96
        $region95: #{tpu_custom_call.1} parent=79 // pred_region
          %566 = dma.done [#allocation9], 1024
        $region96: #{tpu_custom_call.1} parent=79 // pred_fallthru
          _
        // Predicated region
        $region97: #{tpu_custom_call.1} parent=79 // pred_check
          %p567 = pneg %p162
        $region98: #{tpu_custom_call.1} parent=79 // pred_check_branch
          %569 = sbr.rel (%p567) target = $region100
        $region99: #{tpu_custom_call.1} parent=79 // pred_region
          %571 = dma.done [#allocation9], 1024
        $region100: #{tpu_custom_call.1} parent=79 // pred_fallthru
          _
        // Predicated region
        $region101: #{tpu_custom_call.1} parent=79 // pred_check
          %p572 = pneg %p183
        $region102: #{tpu_custom_call.1} parent=79 // pred_check_branch
          %574 = sbr.rel (%p572) target = $region104
        $region103: #{tpu_custom_call.1} parent=79 // pred_region
          %576 = dma.done [#allocation12], 1024
        $region104: #{tpu_custom_call.1} parent=79 // pred_fallthru
          _
        // Predicated region
        $region105: #{tpu_custom_call.1} parent=79 // pred_check
          %p577 = pneg %p246
        $region106: #{tpu_custom_call.1} parent=79 // pred_check_branch
          %579 = sbr.rel (%p577) target = $region108
        $region107: #{tpu_custom_call.1} parent=79 // pred_region
          %581 = dma.done [#allocation12], 2048
        $region108: #{tpu_custom_call.1} parent=79 // pred_fallthru
          _
        // Predicated region
        $region109: #{tpu_custom_call.1} parent=79 // pred_check
          %p582 = pneg %p288
        $region110: #{tpu_custom_call.1} parent=79 // pred_check_branch
          %584 = sbr.rel (%p582) target = $region112
        $region111: #{tpu_custom_call.1} parent=79 // pred_region
          %586 = dma.done [#allocation15], 2048
        $region112: #{tpu_custom_call.1} parent=79 // pred_fallthru
          _
        %s587 = sand.u32 %s44, 1
        %s588 = scalar_lea.sflag [#allocation3], %s587
        %s589 = sand.u32 %s44, 1
        %s590 = smul.addr %s589, 16
        %s591 = scalar_lea.vmem [#allocation2], %s590
        %p592 = pneg %p57
        %p593 = pneg %p54
        %p594 = pneg %p78
        %p595 = pneg %p75
        %p596 = pneg %p99
        %p597 = pneg %p96
        %p598 = pneg %p120
        %p599 = pneg %p117
        %p600 = pneg %p141
        %p601 = pneg %p138
        %p602 = pneg %p162
        %p603 = pneg %p159
        %p604 = pneg %p183
        %p605 = pneg %p180
        %p606 = pneg %p204
        %p607 = pneg %p201
        %p608 = pneg %p225
        %p609 = pneg %p222
        %p610 = pneg %p246
        %p611 = pneg %p243
        %p612 = pneg %p267
        %p613 = pneg %p264
        %p614 = pneg %p288
        %p615 = pneg %p285
        %p616 = pneg %p309
        %p617 = pneg %p306
        %p618 = pneg %p330
        %p619 = pneg %p327
        %p620 = pneg %p351
        %p621 = pneg %p348
        %p622 = pneg %p377
        %p623 = pneg %p374
        %s624 = sand.u32 %s364, 1
        %s625 = scalar_lea.sflag [#allocation4], %s624
        %s626 = sand.u32 %s364, 1
        %s627 = smul.addr %s626, 8
        %s628 = scalar_lea.vmem [#allocation16], %s627
        %v630 = vld [vmem:[%s546] sm:$0xff]
        %v631 = vld [vmem:[%s546 + $0x8] sm:$0xff]
        %v632 = vld [vmem:[#allocation5] sm:$0x1]
        %v633 = vld [vmem:[%s2] sm:$0x1]
        %634 = vadd.xlane.f32.xlu0 %v630
        %v635 = vpop.xlane.xlu0 %634
        %636 = vadd.xlane.f32.xlu0 %v631
        %v637 = vpop.xlane.xlu0 %636
        %v638 = vrcp.pop 128.0
        %v639 = vmul.f32 128.0, %v638
        %v640 = vsub.f32 1.0, %v639
        %v641 = vmul.f32 %v638, %v640
        %v642 = vadd.f32 %v638, %v641
        %vm643 = vweird.f32 %v638
        %v644 = vsel %vm643, %v638, %v642
        %v645 = vmul.f32 %v635, %v644
        %v646 = vmul.f32 %v637, %v644
        %v647 = vsub.f32 %v630, %v645
        %v648 = vsub.f32 %v631, %v646
        %v649 = vmul.f32 %v647, %v647
        %v650 = vmul.f32 %v648, %v648
        %651 = vadd.xlane.f32.xlu0 %v649
        %v652 = vpop.xlane.xlu0 %651
        %653 = vadd.xlane.f32.xlu0 %v650
        %v654 = vpop.xlane.xlu0 %653
        %v655 = vmul.f32 %v652, %v644
        %v656 = vmul.f32 %v654, %v644
        %v657 = vadd.f32 %v655, 1e-05
        %v658 = vadd.f32 %v656, 1e-05
        %v659 = vrsqrt.pop %v657
        %v660 = vmul.f32 %v659, %v657
        %v661 = vmul.f32 %v660, %v659
        %v662 = vmul.f32 0.5, %v661
        %v663 = vsub.f32 1.5, %v662
        %v664 = vmul.f32 %v659, %v663
        %vm665 = vweird.f32 %v657
        %vm666 = vweird.f32 %v659
        %vm667 = vmor %vm665, %vm666
        %v668 = vsel %vm667, %v659, %v664
        %v669 = vrsqrt.pop %v658
        %v670 = vmul.f32 %v669, %v658
        %v671 = vmul.f32 %v670, %v669
        %v672 = vmul.f32 0.5, %v671
        %v673 = vsub.f32 1.5, %v672
        %v674 = vmul.f32 %v669, %v673
        %vm675 = vweird.f32 %v658
        %vm676 = vweird.f32 %v669
        %vm677 = vmor %vm675, %vm676
        %v678 = vsel %vm677, %v669, %v674
        %v679 = vmul.f32 %v647, %v668
        %v680 = vmul.f32 %v648, %v678
        %v682 = vperm.slane %v632, 0
        %v684 = vmul.f32 %v679, %v682
        %v685 = vmul.f32 %v680, %v682
        %v687 = vperm.slane %v633, 0
        %v689 = vadd.f32 %v684, %v687
        %v690 = vadd.f32 %v685, %v687
        %v691 = vpack.c.bf16 %v690, %v689
        %v692 = vld [vmem:[#allocation7] sm:$0xf]
        %v693 = vld [vmem:[#allocation7 + $0x4] sm:$0xf]
        %v694 = vld [vmem:[#allocation7 + $0x8] sm:$0xf]
        %v695 = vld [vmem:[#allocation7 + $0xc] sm:$0xf]
        %v696 = vld [vmem:[#allocation7 + $0x10] sm:$0xf]
        %v697 = vld [vmem:[#allocation7 + $0x14] sm:$0xf]
        %v698 = vld [vmem:[#allocation7 + $0x18] sm:$0xf]
        %v699 = vld [vmem:[#allocation7 + $0x1c] sm:$0xf]
        %v700 = vld [vmem:[#allocation7 + $0x20] sm:$0xf]
        %v701 = vld [vmem:[#allocation7 + $0x24] sm:$0xf]
        %v702 = vld [vmem:[#allocation7 + $0x28] sm:$0xf]
        %v703 = vld [vmem:[#allocation7 + $0x2c] sm:$0xf]
        %v704 = vld [vmem:[#allocation7 + $0x30] sm:$0xf]
        %v705 = vld [vmem:[#allocation7 + $0x34] sm:$0xf]
        %v706 = vld [vmem:[#allocation7 + $0x38] sm:$0xf]
        %v707 = vld [vmem:[#allocation7 + $0x3c] sm:$0xf]
        %v724 = vunpack.c.l.b16 %v692
        %v725 = vunpack.c.l.b16 %v693
        %v726 = vunpack.c.l.b16 %v694
        %v727 = vunpack.c.l.b16 %v695
        %v728 = vunpack.c.l.b16 %v696
        %v729 = vunpack.c.l.b16 %v697
        %v730 = vunpack.c.l.b16 %v698
        %v731 = vunpack.c.l.b16 %v699
        %v732 = vunpack.c.l.b16 %v700
        %v733 = vunpack.c.l.b16 %v701
        %v734 = vunpack.c.l.b16 %v702
        %v735 = vunpack.c.l.b16 %v703
        %v736 = vunpack.c.l.b16 %v704
        %v737 = vunpack.c.l.b16 %v705
        %v738 = vunpack.c.l.b16 %v706
        %v739 = vunpack.c.l.b16 %v707
        %v740 = vpack.c.b16 %v725, %v724
        %v741 = vpack.c.b16 %v727, %v726
        %v742 = vpack.c.b16 %v729, %v728
        %v743 = vpack.c.b16 %v731, %v730
        %v744 = vpack.c.b16 %v733, %v732
        %v745 = vpack.c.b16 %v735, %v734
        %v746 = vpack.c.b16 %v737, %v736
        %v747 = vpack.c.b16 %v739, %v738
        %756 = vmatpush.bf16.msra.mxu0 %v747
        %757 = vmatpush.bf16.msra.mxu0 %v746
        %758 = vmatpush.bf16.msra.mxu0 %v745
        %759 = vmatpush.bf16.msra.mxu0 %v744
        %760 = vmatpush.bf16.msra.mxu0 %v743
        %761 = vmatpush.bf16.msra.mxu0 %v742
        %762 = vmatpush.bf16.msra.mxu0 %v741
        %763 = vmatpush.bf16.msra.mxu0 %v740
        %764 = vmatmul.bf16.gmra.mxu0 %v691
        %v765 = vpop.f32.mrf.mxu0
        %v766 = vadd.f32 0.0, %v765
        %v767 = vpop.f32.mrf.mxu0
        %v768 = vadd.f32 0.0, %v767
        %769 = vdwg.mxu0
        %v770 = vld [vmem:[#allocation8] sm:$0xf]
        %v771 = vld [vmem:[#allocation8 + $0x4] sm:$0xf]
        %v772 = vld [vmem:[#allocation8 + $0x8] sm:$0xf]
        %v773 = vld [vmem:[#allocation8 + $0xc] sm:$0xf]
        %v774 = vld [vmem:[#allocation8 + $0x10] sm:$0xf]
        %v775 = vld [vmem:[#allocation8 + $0x14] sm:$0xf]
        %v776 = vld [vmem:[#allocation8 + $0x18] sm:$0xf]
        %v777 = vld [vmem:[#allocation8 + $0x1c] sm:$0xf]
        %v778 = vld [vmem:[#allocation8 + $0x20] sm:$0xf]
        %v779 = vld [vmem:[#allocation8 + $0x24] sm:$0xf]
        %v780 = vld [vmem:[#allocation8 + $0x28] sm:$0xf]
        %v781 = vld [vmem:[#allocation8 + $0x2c] sm:$0xf]
        %v782 = vld [vmem:[#allocation8 + $0x30] sm:$0xf]
        %v783 = vld [vmem:[#allocation8 + $0x34] sm:$0xf]
        %v784 = vld [vmem:[#allocation8 + $0x38] sm:$0xf]
        %v785 = vld [vmem:[#allocation8 + $0x3c] sm:$0xf]
        %v802 = vunpack.c.l.b16 %v770
        %v803 = vunpack.c.l.b16 %v771
        %v804 = vunpack.c.l.b16 %v772
        %v805 = vunpack.c.l.b16 %v773
        %v806 = vunpack.c.l.b16 %v774
        %v807 = vunpack.c.l.b16 %v775
        %v808 = vunpack.c.l.b16 %v776
        %v809 = vunpack.c.l.b16 %v777
        %v810 = vunpack.c.l.b16 %v778
        %v811 = vunpack.c.l.b16 %v779
        %v812 = vunpack.c.l.b16 %v780
        %v813 = vunpack.c.l.b16 %v781
        %v814 = vunpack.c.l.b16 %v782
        %v815 = vunpack.c.l.b16 %v783
        %v816 = vunpack.c.l.b16 %v784
        %v817 = vunpack.c.l.b16 %v785
        %v818 = vpack.c.b16 %v803, %v802
        %v819 = vpack.c.b16 %v805, %v804
        %v820 = vpack.c.b16 %v807, %v806
        %v821 = vpack.c.b16 %v809, %v808
        %v822 = vpack.c.b16 %v811, %v810
        %v823 = vpack.c.b16 %v813, %v812
        %v824 = vpack.c.b16 %v815, %v814
        %v825 = vpack.c.b16 %v817, %v816
        %834 = vmatpush.bf16.msra.mxu0 %v825
        %835 = vmatpush.bf16.msra.mxu0 %v824
        %836 = vmatpush.bf16.msra.mxu0 %v823
        %837 = vmatpush.bf16.msra.mxu0 %v822
        %838 = vmatpush.bf16.msra.mxu0 %v821
        %839 = vmatpush.bf16.msra.mxu0 %v820
        %840 = vmatpush.bf16.msra.mxu0 %v819
        %841 = vmatpush.bf16.msra.mxu0 %v818
        %842 = vmatmul.bf16.gmra.mxu0 %v691
        %v843 = vpop.f32.mrf.mxu0
        %v844 = vadd.f32 0.0, %v843
        %v845 = vpop.f32.mrf.mxu0
        %v846 = vadd.f32 0.0, %v845
        %847 = vdwg.mxu0
        %v848 = vld [vmem:[#allocation10] sm:$0xf]
        %v849 = vld [vmem:[#allocation10 + $0x4] sm:$0xf]
        %v850 = vld [vmem:[#allocation10 + $0x8] sm:$0xf]
        %v851 = vld [vmem:[#allocation10 + $0xc] sm:$0xf]
        %v852 = vld [vmem:[#allocation10 + $0x10] sm:$0xf]
        %v853 = vld [vmem:[#allocation10 + $0x14] sm:$0xf]
        %v854 = vld [vmem:[#allocation10 + $0x18] sm:$0xf]
        %v855 = vld [vmem:[#allocation10 + $0x1c] sm:$0xf]
        %v856 = vld [vmem:[#allocation10 + $0x20] sm:$0xf]
        %v857 = vld [vmem:[#allocation10 + $0x24] sm:$0xf]
        %v858 = vld [vmem:[#allocation10 + $0x28] sm:$0xf]
        %v859 = vld [vmem:[#allocation10 + $0x2c] sm:$0xf]
        %v860 = vld [vmem:[#allocation10 + $0x30] sm:$0xf]
        %v861 = vld [vmem:[#allocation10 + $0x34] sm:$0xf]
        %v862 = vld [vmem:[#allocation10 + $0x38] sm:$0xf]
        %v863 = vld [vmem:[#allocation10 + $0x3c] sm:$0xf]
        %v880 = vunpack.c.l.b16 %v848
        %v881 = vunpack.c.l.b16 %v849
        %v882 = vunpack.c.l.b16 %v850
        %v883 = vunpack.c.l.b16 %v851
        %v884 = vunpack.c.l.b16 %v852
        %v885 = vunpack.c.l.b16 %v853
        %v886 = vunpack.c.l.b16 %v854
        %v887 = vunpack.c.l.b16 %v855
        %v888 = vunpack.c.l.b16 %v856
        %v889 = vunpack.c.l.b16 %v857
        %v890 = vunpack.c.l.b16 %v858
        %v891 = vunpack.c.l.b16 %v859
        %v892 = vunpack.c.l.b16 %v860
        %v893 = vunpack.c.l.b16 %v861
        %v894 = vunpack.c.l.b16 %v862
        %v895 = vunpack.c.l.b16 %v863
        %v896 = vpack.c.b16 %v881, %v880
        %v897 = vpack.c.b16 %v883, %v882
        %v898 = vpack.c.b16 %v885, %v884
        %v899 = vpack.c.b16 %v887, %v886
        %v900 = vpack.c.b16 %v889, %v888
        %v901 = vpack.c.b16 %v891, %v890
        %v902 = vpack.c.b16 %v893, %v892
        %v903 = vpack.c.b16 %v895, %v894
        %912 = vmatpush.bf16.msra.mxu0 %v903
        %913 = vmatpush.bf16.msra.mxu0 %v902
        %914 = vmatpush.bf16.msra.mxu0 %v901
        %915 = vmatpush.bf16.msra.mxu0 %v900
        %916 = vmatpush.bf16.msra.mxu0 %v899
        %917 = vmatpush.bf16.msra.mxu0 %v898
        %918 = vmatpush.bf16.msra.mxu0 %v897
        %919 = vmatpush.bf16.msra.mxu0 %v896
        %920 = vmatmul.bf16.gmra.mxu0 %v691
        %v921 = vpop.f32.mrf.mxu0
        %v922 = vadd.f32 0.0, %v921
        %v923 = vpop.f32.mrf.mxu0
        %v924 = vadd.f32 0.0, %v923
        %925 = vdwg.mxu0
        %v926 = vmul.f32 %v766, 0.088388346
        %v927 = vmul.f32 %v768, 0.088388346
        %v928 = vpack.c.bf16 %v927, %v926
        %v929 = vpack.c.bf16 %v846, %v844
        %930 = vmatpush.bf16.xpose.msra.mxu0 0
        %931 = vmatpush.bf16.xpose.msra.mxu0 0
        %932 = vmatpush.bf16.xpose.msra.mxu0 0
        %933 = vmatpush.bf16.xpose.msra.mxu0 0
        %934 = vmatpush.bf16.xpose.msra.mxu0 0
        %935 = vmatpush.bf16.xpose.msra.mxu0 0
        %936 = vmatpush.bf16.xpose.msra.mxu0 0
        %937 = vmatpush.bf16.xpose.msra.mxu0 %v929
        %938 = vmatmul.bf16.gmra.mxu0 %v928
        %v939 = vpop.f32.mrf.mxu0
        %v940 = vadd.f32 0.0, %v939
        %v941 = vpop.f32.mrf.mxu0
        %v942 = vadd.f32 0.0, %v941
        %943 = vdwg.mxu0
        %v944 = vlaneseq
        %v945 = vshrl.u32 %v944, 7
        %v946 = vadd.s32 %v945, 8
        %v947 = vlaneseq
        %v948 = vand.u32 %v947, 127
        %vm949 = vcmp.le.s32.totalorder %v948, %v945
        %vm950 = vcmp.le.s32.totalorder %v948, %v946
        %v951 = vsel %vm949, %v940, -1e+30
        %v952 = vsel %vm950, %v942, -1e+30
        %vm953 = vcmask 130048
        %v954 = vsel %vm953, %v951, -inf
        %955 = vmax.xlane.f32.xlu0 %v954
        %v956 = vpop.xlane.xlu0 %955
        %v957 = vsel %vm953, %v952, -inf
        %958 = vmax.xlane.f32.xlu0 %v957
        %v959 = vpop.xlane.xlu0 %958
        %v960 = vsub.f32 %v951, %v956
        %v961 = vsub.f32 %v952, %v959
        %v962 = vmul.f32 %v960, 1.442695
        %v963 = vpow.pop %v962
        %v964 = vmul.f32 %v961, 1.442695
        %v965 = vpow.pop %v964
        %v966 = vsel %vm953, %v963, 0.0
        %967 = vadd.xlane.f32.xlu0 %v966
        %v968 = vpop.xlane.xlu0 %967
        %v969 = vsel %vm953, %v965, 0.0
        %970 = vadd.xlane.f32.xlu0 %v969
        %v971 = vpop.xlane.xlu0 %970
        %v972 = vrcp.pop %v968
        %v973 = vrcp.pop %v971
        %v974 = vmul.f32 %v963, %v972
        %v975 = vmul.f32 %v965, %v973
        %v976 = vpack.c.bf16 %v975, %v974
        %v977 = vpack.c.bf16 %v924, %v922
        %v979 = vsel %vm953, %v976, 0
        %981 = vmatpush.bf16.msra.mxu0 0
        %982 = vmatpush.bf16.msra.mxu0 0
        %983 = vmatpush.bf16.msra.mxu0 0
        %984 = vmatpush.bf16.msra.mxu0 0
        %985 = vmatpush.bf16.msra.mxu0 0
        %986 = vmatpush.bf16.msra.mxu0 0
        %987 = vmatpush.bf16.msra.mxu0 0
        %988 = vmatpush.bf16.msra.mxu0 %v977
        %989 = vmatmul.bf16.gmra.mxu0 %v979
        %v990 = vpop.f32.mrf.mxu0
        %v991 = vadd.f32 0.0, %v990
        %v992 = vpop.f32.mrf.mxu0
        %v993 = vadd.f32 0.0, %v992
        %994 = vdwg.mxu0
        %v995 = vpack.c.bf16 %v993, %v991
        %v996 = vld [vmem:[#allocation11] sm:$0xf]
        %v997 = vld [vmem:[#allocation11 + $0x4] sm:$0xf]
        %v998 = vld [vmem:[#allocation11 + $0x8] sm:$0xf]
        %v999 = vld [vmem:[#allocation11 + $0xc] sm:$0xf]
        %v1000 = vld [vmem:[#allocation11 + $0x10] sm:$0xf]
        %v1001 = vld [vmem:[#allocation11 + $0x14] sm:$0xf]
        %v1002 = vld [vmem:[#allocation11 + $0x18] sm:$0xf]
        %v1003 = vld [vmem:[#allocation11 + $0x1c] sm:$0xf]
        %v1004 = vld [vmem:[#allocation11 + $0x20] sm:$0xf]
        %v1005 = vld [vmem:[#allocation11 + $0x24] sm:$0xf]
        %v1006 = vld [vmem:[#allocation11 + $0x28] sm:$0xf]
        %v1007 = vld [vmem:[#allocation11 + $0x2c] sm:$0xf]
        %v1008 = vld [vmem:[#allocation11 + $0x30] sm:$0xf]
        %v1009 = vld [vmem:[#allocation11 + $0x34] sm:$0xf]
        %v1010 = vld [vmem:[#allocation11 + $0x38] sm:$0xf]
        %v1011 = vld [vmem:[#allocation11 + $0x3c] sm:$0xf]
        %v1028 = vunpack.c.l.b16 %v996
        %v1029 = vunpack.c.l.b16 %v997
        %v1030 = vunpack.c.l.b16 %v998
        %v1031 = vunpack.c.l.b16 %v999
        %v1032 = vunpack.c.l.b16 %v1000
        %v1033 = vunpack.c.l.b16 %v1001
        %v1034 = vunpack.c.l.b16 %v1002
        %v1035 = vunpack.c.l.b16 %v1003
        %v1036 = vunpack.c.l.b16 %v1004
        %v1037 = vunpack.c.l.b16 %v1005
        %v1038 = vunpack.c.l.b16 %v1006
        %v1039 = vunpack.c.l.b16 %v1007
        %v1040 = vunpack.c.l.b16 %v1008
        %v1041 = vunpack.c.l.b16 %v1009
        %v1042 = vunpack.c.l.b16 %v1010
        %v1043 = vunpack.c.l.b16 %v1011
        %v1044 = vpack.c.b16 %v1029, %v1028
        %v1045 = vpack.c.b16 %v1031, %v1030
        %v1046 = vpack.c.b16 %v1033, %v1032
        %v1047 = vpack.c.b16 %v1035, %v1034
        %v1048 = vpack.c.b16 %v1037, %v1036
        %v1049 = vpack.c.b16 %v1039, %v1038
        %v1050 = vpack.c.b16 %v1041, %v1040
        %v1051 = vpack.c.b16 %v1043, %v1042
        %1060 = vmatpush.bf16.msra.mxu0 %v1051
        %1061 = vmatpush.bf16.msra.mxu0 %v1050
        %1062 = vmatpush.bf16.msra.mxu0 %v1049
        %1063 = vmatpush.bf16.msra.mxu0 %v1048
        %1064 = vmatpush.bf16.msra.mxu0 %v1047
        %1065 = vmatpush.bf16.msra.mxu0 %v1046
        %1066 = vmatpush.bf16.msra.mxu0 %v1045
        %1067 = vmatpush.bf16.msra.mxu0 %v1044
        %1068 = vmatmul.bf16.gmra.mxu0 %v995
        %v1069 = vpop.f32.mrf.mxu0
        %v1070 = vadd.f32 0.0, %v1069
        %v1071 = vpop.f32.mrf.mxu0
        %v1072 = vadd.f32 0.0, %v1071
        %1073 = vdwg.mxu0
        %v1074 = vadd.f32 %v630, %v1070
        %v1075 = vadd.f32 %v631, %v1072
        %v1076 = vld [vmem:[%s7] sm:$0x1]
        %v1077 = vld [vmem:[%s8] sm:$0x1]
        %1078 = vadd.xlane.f32.xlu0 %v1074
        %v1079 = vpop.xlane.xlu0 %1078
        %1080 = vadd.xlane.f32.xlu0 %v1075
        %v1081 = vpop.xlane.xlu0 %1080
        %v1082 = vmul.f32 %v1079, %v644
        %v1083 = vmul.f32 %v1081, %v644
        %v1084 = vsub.f32 %v1074, %v1082
        %v1085 = vsub.f32 %v1075, %v1083
        %v1086 = vmul.f32 %v1084, %v1084
        %v1087 = vmul.f32 %v1085, %v1085
        %1088 = vadd.xlane.f32.xlu0 %v1086
        %v1089 = vpop.xlane.xlu0 %1088
        %1090 = vadd.xlane.f32.xlu0 %v1087
        %v1091 = vpop.xlane.xlu0 %1090
        %v1092 = vmul.f32 %v1089, %v644
        %v1093 = vmul.f32 %v1091, %v644
        %v1094 = vadd.f32 %v1092, 1e-05
        %v1095 = vadd.f32 %v1093, 1e-05
        %v1096 = vrsqrt.pop %v1094
        %v1097 = vmul.f32 %v1096, %v1094
        %v1098 = vmul.f32 %v1097, %v1096
        %v1099 = vmul.f32 0.5, %v1098
        %v1100 = vsub.f32 1.5, %v1099
        %v1101 = vmul.f32 %v1096, %v1100
        %vm1102 = vweird.f32 %v1094
        %vm1103 = vweird.f32 %v1096
        %vm1104 = vmor %vm1102, %vm1103
        %v1105 = vsel %vm1104, %v1096, %v1101
        %v1106 = vrsqrt.pop %v1095
        %v1107 = vmul.f32 %v1106, %v1095
        %v1108 = vmul.f32 %v1107, %v1106
        %v1109 = vmul.f32 0.5, %v1108
        %v1110 = vsub.f32 1.5, %v1109
        %v1111 = vmul.f32 %v1106, %v1110
        %vm1112 = vweird.f32 %v1095
        %vm1113 = vweird.f32 %v1106
        %vm1114 = vmor %vm1112, %vm1113
        %v1115 = vsel %vm1114, %v1106, %v1111
        %v1116 = vmul.f32 %v1084, %v1105
        %v1117 = vmul.f32 %v1085, %v1115
        %v1119 = vperm.slane %v1076, 0
        %v1121 = vmul.f32 %v1116, %v1119
        %v1122 = vmul.f32 %v1117, %v1119
        %v1124 = vperm.slane %v1077, 0
        %v1126 = vadd.f32 %v1121, %v1124
        %v1127 = vadd.f32 %v1122, %v1124
        %v1128 = vpack.c.bf16 %v1127, %v1126
        %v1129 = vld [vmem:[#allocation13] sm:$0xff]
        %v1130 = vld [vmem:[#allocation13 + $0x8] sm:$0xff]
        %v1131 = vld [vmem:[#allocation13 + $0x10] sm:$0xff]
        %v1132 = vld [vmem:[#allocation13 + $0x18] sm:$0xff]
        %v1133 = vld [vmem:[#allocation13 + $0x20] sm:$0xff]
        %v1134 = vld [vmem:[#allocation13 + $0x28] sm:$0xff]
        %v1135 = vld [vmem:[#allocation13 + $0x30] sm:$0xff]
        %v1136 = vld [vmem:[#allocation13 + $0x38] sm:$0xff]
        %v1137 = vld [vmem:[#allocation13 + $0x40] sm:$0xff]
        %v1138 = vld [vmem:[#allocation13 + $0x48] sm:$0xff]
        %v1139 = vld [vmem:[#allocation13 + $0x50] sm:$0xff]
        %v1140 = vld [vmem:[#allocation13 + $0x58] sm:$0xff]
        %v1141 = vld [vmem:[#allocation13 + $0x60] sm:$0xff]
        %v1142 = vld [vmem:[#allocation13 + $0x68] sm:$0xff]
        %v1143 = vld [vmem:[#allocation13 + $0x70] sm:$0xff]
        %v1144 = vld [vmem:[#allocation13 + $0x78] sm:$0xff]
        %v1145 = vld [vmem:[%s10] sm:$0x3]
        %v1147 = vperm.slane %v1145, 0
        %v1148 = vperm.slane %v1145, 1
        %v1167 = vunpack.c.l.b16 %v1129
        %v1168 = vunpack.c.h.b16 %v1129
        %v1169 = vunpack.c.l.b16 %v1130
        %v1170 = vunpack.c.h.b16 %v1130
        %v1171 = vunpack.c.l.b16 %v1131
        %v1172 = vunpack.c.h.b16 %v1131
        %v1173 = vunpack.c.l.b16 %v1132
        %v1174 = vunpack.c.h.b16 %v1132
        %v1175 = vunpack.c.l.b16 %v1133
        %v1176 = vunpack.c.h.b16 %v1133
        %v1177 = vunpack.c.l.b16 %v1134
        %v1178 = vunpack.c.h.b16 %v1134
        %v1179 = vunpack.c.l.b16 %v1135
        %v1180 = vunpack.c.h.b16 %v1135
        %v1181 = vunpack.c.l.b16 %v1136
        %v1182 = vunpack.c.h.b16 %v1136
        %v1183 = vunpack.c.l.b16 %v1137
        %v1184 = vunpack.c.h.b16 %v1137
        %v1185 = vunpack.c.l.b16 %v1138
        %v1186 = vunpack.c.h.b16 %v1138
        %v1187 = vunpack.c.l.b16 %v1139
        %v1188 = vunpack.c.h.b16 %v1139
        %v1189 = vunpack.c.l.b16 %v1140
        %v1190 = vunpack.c.h.b16 %v1140
        %v1191 = vunpack.c.l.b16 %v1141
        %v1192 = vunpack.c.h.b16 %v1141
        %v1193 = vunpack.c.l.b16 %v1142
        %v1194 = vunpack.c.h.b16 %v1142
        %v1195 = vunpack.c.l.b16 %v1143
        %v1196 = vunpack.c.h.b16 %v1143
        %v1197 = vunpack.c.l.b16 %v1144
        %v1198 = vunpack.c.h.b16 %v1144
        %v1199 = vpack.c.b16 %v1169, %v1167
        %v1200 = vpack.c.b16 %v1170, %v1168
        %v1201 = vpack.c.b16 %v1173, %v1171
        %v1202 = vpack.c.b16 %v1174, %v1172
        %v1203 = vpack.c.b16 %v1177, %v1175
        %v1204 = vpack.c.b16 %v1178, %v1176
        %v1205 = vpack.c.b16 %v1181, %v1179
        %v1206 = vpack.c.b16 %v1182, %v1180
        %v1207 = vpack.c.b16 %v1185, %v1183
        %v1208 = vpack.c.b16 %v1186, %v1184
        %v1209 = vpack.c.b16 %v1189, %v1187
        %v1210 = vpack.c.b16 %v1190, %v1188
        %v1211 = vpack.c.b16 %v1193, %v1191
        %v1212 = vpack.c.b16 %v1194, %v1192
        %v1213 = vpack.c.b16 %v1197, %v1195
        %v1214 = vpack.c.b16 %v1198, %v1196
        %1231 = vmatpush.bf16.msra.mxu0 %v1213
        %1232 = vmatpush.bf16.msra.mxu0 %v1211
        %1233 = vmatpush.bf16.msra.mxu0 %v1209
        %1234 = vmatpush.bf16.msra.mxu0 %v1207
        %1235 = vmatpush.bf16.msra.mxu0 %v1205
        %1236 = vmatpush.bf16.msra.mxu0 %v1203
        %1237 = vmatpush.bf16.msra.mxu0 %v1201
        %1238 = vmatpush.bf16.msra.mxu0 %v1199
        %1239 = vmatmul.bf16.gmra.mxu0 %v1128
        %v1240 = vpop.f32.mrf.mxu0
        %v1241 = vadd.f32 %v1147, %v1240
        %v1242 = vpop.f32.mrf.mxu0
        %v1243 = vadd.f32 %v1147, %v1242
        %1244 = vdwg.mxu0
        %1245 = vmatpush.bf16.msra.mxu0 %v1214
        %1246 = vmatpush.bf16.msra.mxu0 %v1212
        %1247 = vmatpush.bf16.msra.mxu0 %v1210
        %1248 = vmatpush.bf16.msra.mxu0 %v1208
        %1249 = vmatpush.bf16.msra.mxu0 %v1206
        %1250 = vmatpush.bf16.msra.mxu0 %v1204
        %1251 = vmatpush.bf16.msra.mxu0 %v1202
        %1252 = vmatpush.bf16.msra.mxu0 %v1200
        %1253 = vmatmul.bf16.gmra.mxu0 %v1128
        %v1254 = vpop.f32.mrf.mxu0
        %v1255 = vadd.f32 %v1148, %v1254
        %v1256 = vpop.f32.mrf.mxu0
        %v1257 = vadd.f32 %v1148, %v1256
        %1258 = vdwg.mxu0
        %v1259 = vmul.f32 %v1241, %v1241
        %v1260 = vmul.f32 %v1255, %v1255
        %v1261 = vmul.f32 %v1243, %v1243
        %v1262 = vmul.f32 %v1257, %v1257
        %v1263 = vmul.f32 %v1241, %v1259
        %v1264 = vmul.f32 %v1255, %v1260
        %v1265 = vmul.f32 %v1243, %v1261
        %v1266 = vmul.f32 %v1257, %v1262
        %v1267 = vmul.f32 %v1263, 0.044715
        %v1268 = vmul.f32 %v1264, 0.044715
        %v1269 = vmul.f32 %v1265, 0.044715
        %v1270 = vmul.f32 %v1266, 0.044715
        %v1271 = vadd.f32 %v1241, %v1267
        %v1272 = vadd.f32 %v1255, %v1268
        %v1273 = vadd.f32 %v1243, %v1269
        %v1274 = vadd.f32 %v1257, %v1270
        %v1275 = vmul.f32 %v1271, 0.7978846
        %v1276 = vmul.f32 %v1272, 0.7978846
        %v1277 = vmul.f32 %v1273, 0.7978846
        %v1278 = vmul.f32 %v1274, 0.7978846
        %v1279 = vtanh.pop %v1275
        %v1280 = vtanh.pop %v1276
        %v1281 = vtanh.pop %v1277
        %v1282 = vtanh.pop %v1278
        %v1283 = vadd.f32 %v1279, 1.0
        %v1284 = vadd.f32 %v1280, 1.0
        %v1285 = vadd.f32 %v1281, 1.0
        %v1286 = vadd.f32 %v1282, 1.0
        %v1287 = vmul.f32 %v1283, 0.5
        %v1288 = vmul.f32 %v1284, 0.5
        %v1289 = vmul.f32 %v1285, 0.5
        %v1290 = vmul.f32 %v1286, 0.5
        %v1291 = vmul.f32 %v1241, %v1287
        %v1292 = vmul.f32 %v1255, %v1288
        %v1293 = vmul.f32 %v1243, %v1289
        %v1294 = vmul.f32 %v1257, %v1290
        %v1295 = vpack.c.bf16 %v1293, %v1291
        %v1296 = vpack.c.bf16 %v1294, %v1292
        %v1297 = vld [vmem:[#allocation14] sm:$0xf]
        %v1298 = vld [vmem:[#allocation14 + $0x4] sm:$0xf]
        %v1299 = vld [vmem:[#allocation14 + $0x8] sm:$0xf]
        %v1300 = vld [vmem:[#allocation14 + $0xc] sm:$0xf]
        %v1301 = vld [vmem:[#allocation14 + $0x10] sm:$0xf]
        %v1302 = vld [vmem:[#allocation14 + $0x14] sm:$0xf]
        %v1303 = vld [vmem:[#allocation14 + $0x18] sm:$0xf]
        %v1304 = vld [vmem:[#allocation14 + $0x1c] sm:$0xf]
        %v1305 = vld [vmem:[#allocation14 + $0x20] sm:$0xf]
        %v1306 = vld [vmem:[#allocation14 + $0x24] sm:$0xf]
        %v1307 = vld [vmem:[#allocation14 + $0x28] sm:$0xf]
        %v1308 = vld [vmem:[#allocation14 + $0x2c] sm:$0xf]
        %v1309 = vld [vmem:[#allocation14 + $0x30] sm:$0xf]
        %v1310 = vld [vmem:[#allocation14 + $0x34] sm:$0xf]
        %v1311 = vld [vmem:[#allocation14 + $0x38] sm:$0xf]
        %v1312 = vld [vmem:[#allocation14 + $0x3c] sm:$0xf]
        %v1313 = vld [vmem:[#allocation14 + $0x40] sm:$0xf]
        %v1314 = vld [vmem:[#allocation14 + $0x44] sm:$0xf]
        %v1315 = vld [vmem:[#allocation14 + $0x48] sm:$0xf]
        %v1316 = vld [vmem:[#allocation14 + $0x4c] sm:$0xf]
        %v1317 = vld [vmem:[#allocation14 + $0x50] sm:$0xf]
        %v1318 = vld [vmem:[#allocation14 + $0x54] sm:$0xf]
        %v1319 = vld [vmem:[#allocation14 + $0x58] sm:$0xf]
        %v1320 = vld [vmem:[#allocation14 + $0x5c] sm:$0xf]
        %v1321 = vld [vmem:[#allocation14 + $0x60] sm:$0xf]
        %v1322 = vld [vmem:[#allocation14 + $0x64] sm:$0xf]
        %v1323 = vld [vmem:[#allocation14 + $0x68] sm:$0xf]
        %v1324 = vld [vmem:[#allocation14 + $0x6c] sm:$0xf]
        %v1325 = vld [vmem:[#allocation14 + $0x70] sm:$0xf]
        %v1326 = vld [vmem:[#allocation14 + $0x74] sm:$0xf]
        %v1327 = vld [vmem:[#allocation14 + $0x78] sm:$0xf]
        %v1328 = vld [vmem:[#allocation14 + $0x7c] sm:$0xf]
        %v1361 = vunpack.c.l.b16 %v1297
        %v1362 = vunpack.c.l.b16 %v1298
        %v1363 = vunpack.c.l.b16 %v1299
        %v1364 = vunpack.c.l.b16 %v1300
        %v1365 = vunpack.c.l.b16 %v1301
        %v1366 = vunpack.c.l.b16 %v1302
        %v1367 = vunpack.c.l.b16 %v1303
        %v1368 = vunpack.c.l.b16 %v1304
        %v1369 = vunpack.c.l.b16 %v1305
        %v1370 = vunpack.c.l.b16 %v1306
        %v1371 = vunpack.c.l.b16 %v1307
        %v1372 = vunpack.c.l.b16 %v1308
        %v1373 = vunpack.c.l.b16 %v1309
        %v1374 = vunpack.c.l.b16 %v1310
        %v1375 = vunpack.c.l.b16 %v1311
        %v1376 = vunpack.c.l.b16 %v1312
        %v1377 = vunpack.c.l.b16 %v1313
        %v1378 = vunpack.c.l.b16 %v1314
        %v1379 = vunpack.c.l.b16 %v1315
        %v1380 = vunpack.c.l.b16 %v1316
        %v1381 = vunpack.c.l.b16 %v1317
        %v1382 = vunpack.c.l.b16 %v1318
        %v1383 = vunpack.c.l.b16 %v1319
        %v1384 = vunpack.c.l.b16 %v1320
        %v1385 = vunpack.c.l.b16 %v1321
        %v1386 = vunpack.c.l.b16 %v1322
        %v1387 = vunpack.c.l.b16 %v1323
        %v1388 = vunpack.c.l.b16 %v1324
        %v1389 = vunpack.c.l.b16 %v1325
        %v1390 = vunpack.c.l.b16 %v1326
        %v1391 = vunpack.c.l.b16 %v1327
        %v1392 = vunpack.c.l.b16 %v1328
        %v1393 = vpack.c.b16 %v1362, %v1361
        %v1394 = vpack.c.b16 %v1364, %v1363
        %v1395 = vpack.c.b16 %v1366, %v1365
        %v1396 = vpack.c.b16 %v1368, %v1367
        %v1397 = vpack.c.b16 %v1370, %v1369
        %v1398 = vpack.c.b16 %v1372, %v1371
        %v1399 = vpack.c.b16 %v1374, %v1373
        %v1400 = vpack.c.b16 %v1376, %v1375
        %v1401 = vpack.c.b16 %v1378, %v1377
        %v1402 = vpack.c.b16 %v1380, %v1379
        %v1403 = vpack.c.b16 %v1382, %v1381
        %v1404 = vpack.c.b16 %v1384, %v1383
        %v1405 = vpack.c.b16 %v1386, %v1385
        %v1406 = vpack.c.b16 %v1388, %v1387
        %v1407 = vpack.c.b16 %v1390, %v1389
        %v1408 = vpack.c.b16 %v1392, %v1391
        %1425 = vmatpush.bf16.msra.mxu0 %v1400
        %1426 = vmatpush.bf16.msra.mxu0 %v1399
        %1427 = vmatpush.bf16.msra.mxu0 %v1398
        %1428 = vmatpush.bf16.msra.mxu0 %v1397
        %1429 = vmatpush.bf16.msra.mxu0 %v1396
        %1430 = vmatpush.bf16.msra.mxu0 %v1395
        %1431 = vmatpush.bf16.msra.mxu0 %v1394
        %1432 = vmatpush.bf16.msra.mxu0 %v1393
        %1433 = vmatmul.bf16.gmra.mxu0 %v1295
        %v1434 = vpop.f32.mrf.mxu0
        %v1435 = vadd.f32 0.0, %v1434
        %v1436 = vpop.f32.mrf.mxu0
        %v1437 = vadd.f32 0.0, %v1436
        %1438 = vdwg.mxu0
        %1439 = vmatpush.bf16.msra.mxu0 %v1408
        %1440 = vmatpush.bf16.msra.mxu0 %v1407
        %1441 = vmatpush.bf16.msra.mxu0 %v1406
        %1442 = vmatpush.bf16.msra.mxu0 %v1405
        %1443 = vmatpush.bf16.msra.mxu0 %v1404
        %1444 = vmatpush.bf16.msra.mxu0 %v1403
        %1445 = vmatpush.bf16.msra.mxu0 %v1402
        %1446 = vmatpush.bf16.msra.mxu0 %v1401
        %1447 = vmatmul.bf16.gmra.mxu0 %v1296
        %v1448 = vpop.f32.mrf.mxu0
        %v1449 = vadd.f32 %v1435, %v1448
        %v1450 = vpop.f32.mrf.mxu0
        %v1451 = vadd.f32 %v1437, %v1450
        %1452 = vdwg.mxu0
        %v1453 = vadd.f32 %v1074, %v1449
        %v1454 = vadd.f32 %v1075, %v1451
        %v1455 = vld [vmem:[%s12] sm:$0x1]
        %v1457 = vperm.slane %v1455, 0
        %v1459 = vadd.f32 %v1453, %v1457
        %v1460 = vadd.f32 %v1454, %v1457
        %v1461 = vld [vmem:[%s13] sm:$0x1]
        %v1462 = vld [vmem:[%s14] sm:$0x1]
        %1463 = vadd.xlane.f32.xlu0 %v1459
        %v1464 = vpop.xlane.xlu0 %1463
        %1465 = vadd.xlane.f32.xlu0 %v1460
        %v1466 = vpop.xlane.xlu0 %1465
        %v1467 = vmul.f32 %v1464, %v644
        %v1468 = vmul.f32 %v1466, %v644
        %v1469 = vsub.f32 %v1459, %v1467
        %v1470 = vsub.f32 %v1460, %v1468
        %v1471 = vmul.f32 %v1469, %v1469
        %v1472 = vmul.f32 %v1470, %v1470
        %1473 = vadd.xlane.f32.xlu0 %v1471
        %v1474 = vpop.xlane.xlu0 %1473
        %1475 = vadd.xlane.f32.xlu0 %v1472
        %v1476 = vpop.xlane.xlu0 %1475
        %v1477 = vmul.f32 %v1474, %v644
        %v1478 = vmul.f32 %v1476, %v644
        %v1479 = vadd.f32 %v1477, 1e-05
        %v1480 = vadd.f32 %v1478, 1e-05
        %v1481 = vrsqrt.pop %v1479
        %v1482 = vmul.f32 %v1481, %v1479
        %v1483 = vmul.f32 %v1482, %v1481
        %v1484 = vmul.f32 0.5, %v1483
        %v1485 = vsub.f32 1.5, %v1484
        %v1486 = vmul.f32 %v1481, %v1485
        %vm1487 = vweird.f32 %v1479
        %vm1488 = vweird.f32 %v1481
        %vm1489 = vmor %vm1487, %vm1488
        %v1490 = vsel %vm1489, %v1481, %v1486
        %v1491 = vrsqrt.pop %v1480
        %v1492 = vmul.f32 %v1491, %v1480
        %v1493 = vmul.f32 %v1492, %v1491
        %v1494 = vmul.f32 0.5, %v1493
        %v1495 = vsub.f32 1.5, %v1494
        %v1496 = vmul.f32 %v1491, %v1495
        %vm1497 = vweird.f32 %v1480
        %vm1498 = vweird.f32 %v1491
        %vm1499 = vmor %vm1497, %vm1498
        %v1500 = vsel %vm1499, %v1491, %v1496
        %v1501 = vmul.f32 %v1469, %v1490
        %v1502 = vmul.f32 %v1470, %v1500
        %v1504 = vperm.slane %v1461, 0
        %v1506 = vmul.f32 %v1501, %v1504
        %v1507 = vmul.f32 %v1502, %v1504
        %v1509 = vperm.slane %v1462, 0
        %v1511 = vadd.f32 %v1506, %v1509
        %v1512 = vadd.f32 %v1507, %v1509
        %v1513 = vpack.c.bf16 %v1511, %v1511
        %v1514 = vpack.c.bf16 %v1512, %v1512
        %1515 = vst [vmem:[%s628] sm:$0xf] %v1513
        %1516 = vst [vmem:[%s628 + $0x4] sm:$0xf] %v1514
        %s1517 = sand.u32 %s364, 1
        %s1518 = scalar_lea.sflag [#allocation4], %s1517
        %s1519 = sand.u32 %s364, 1
        %s1520 = smul.addr %s1519, 8
        %s1521 = scalar_lea.vmem [#allocation16], %s1520
        // Predicated region
        $region113: #{tpu_custom_call.1} parent=79 // pred_check
          %p1522 = pneg %p374
        $region114: #{tpu_custom_call.1} parent=79 // pred_check_branch
          %1524 = sbr.rel (%p1522) target = $region116
        $region115: #{tpu_custom_call.1} parent=79 // pred_region
          %1526 = vsyncadd %s1518, 0
          %s1527 = smul.addr %s36, 2
          %s1528 = smul.addr %s1527, 4
          %s1529 = scalar_lea.hbm %s15, %s1528
          %s1530 = sshll.u32 %s1521, 4
          %s1531 = int_to_ptr.vmem [resolvable:$true] %s1530
          %s1532 = sshll.u32 %s1529, 4
          %s1533 = int_to_ptr.hbm [resolvable:$true] %s1532
          %1538 = dma.vmem_to_hbm [thread:$0]  %s1531, 128, %s1533, %s1518, 64, 64, 4
        $region116: #{tpu_custom_call.1} parent=79 // pred_fallthru
          _
      $region80: #{tpu_custom_call.1} parent=5 // pred_fallthru
        _
      %p1539 = scmp.le.s32.totalorder 2, %s31
      // Predicated region
      $region117: #{tpu_custom_call.1} parent=5 // pred_check
        %p1540 = pneg %p1539
      $region118: #{tpu_custom_call.1} parent=5 // pred_check_branch
        %1542 = sbr.rel (%p1540) target = $region120
      $region119: #{tpu_custom_call.1} parent=5 // pred_region
        %s1543 = ssub.s32 %s31, 2
        // Predicated region
        $region121: #{tpu_custom_call.1} parent=119 // pred_check
          %p1544 = pneg %p380
        $region122: #{tpu_custom_call.1} parent=119 // pred_check_branch
          %1546 = sbr.rel (%p1544) target = $region124
        $region123: #{tpu_custom_call.1} parent=119 // pred_region
          %s1547 = sand.u32 %s365, 1
          %s1548 = scalar_lea.sflag [#allocation4], %s1547
          %s1549 = sand.u32 %s365, 1
          %s1550 = smul.addr %s1549, 8
          %s1551 = scalar_lea.vmem [#allocation16], %s1550
          %1553 = dma.done %s1548, 128
        $region124: #{tpu_custom_call.1} parent=119 // pred_fallthru
          _
      $region120: #{tpu_custom_call.1} parent=5 // pred_fallthru
        _
    $region6: #{tpu_custom_call.1} parent=1 // loop_footer
      %s35 = sadd.s32 1, %s31
    $region7: #{tpu_custom_call.1} parent=1 // loop_footer_branch
      %30 = sbr.rel target = $region3
    $region8: #{tpu_custom_call.1} parent=1 // loop_exit
      _
    %1554 = vsyncpa [#allocation3], 1
    %s1555 = scalar_lea.sflag [#allocation3], 1
    %1556 = vsyncpa %s1555, 1
    %1557 = vsyncpa [#allocation6], 1
    %1558 = vsyncpa [#allocation9], 1
    %1559 = vsyncpa [#allocation12], 1
    %1560 = vsyncpa [#allocation15], 1
    %1561 = vsyncpa [#allocation4], 1
    %s1562 = scalar_lea.sflag [#allocation4], 1
    %1563 = vsyncpa %s1562, 1

</llo_original>
